<compile_context>
chip_gen: v5e
topology: v5e:2x2
jax: 0.10.0
libtpu: 0.0.40
codegen_flags: <defaults>
</compile_context>

<pallas_src>
import numpy as np
import jax
import jax.numpy as jnp
from jax import lax
from jax.experimental import pallas as pl
from jax.experimental.pallas import tpu as pltpu

_HI = lax.Precision.HIGHEST  # reference only

# Layer geometry: (Cin, Cout, K, pad, H_in); square inputs, pooled H = H_in // 2
CONV_CFG = [
    (1, 4, 5, 2, 28),
    (4, 8, 3, 1, 14),
    (8, 16, 3, 1, 7),
]


# ---------------------------------------------------------------------------
# The fused Pallas kernel
# ---------------------------------------------------------------------------
def fused_forward_kernel(plane1_ref,                       # (32, 128) H-padded image plane
                         rhs1_ref, rhs2_ref, rhs3_ref,     # ((K+1)*128, 256) bf16 conv GEMM rhs
                         cb1_ref, cb2_ref, cb3_ref,        # (1, 128) conv bias rows (zero-padded)
                         w1p_ref, lb1_ref,                 # Linear1: (384, 128) bf16, (1, 128)
                         w2t_ref, lb2_ref,                 # Linear2: (128, 128) bf16, (1, 128)
                         o_ref,                            # (1, 128) softmax output (lanes 0..9 valid)
                         plane2_ref, plane3_ref):          # (16, 128) f32 H-padded activation planes

    def conv_pool_relu(plane_ref, rhs_ref, bias_ref, k, ho):
        """Conv2d(stride 1, 'same' zero pad) -> MaxPool2d(2,2) -> ReLU, one dot.

        im2row along H only: K+1 stride-2 row gathers concatenated at 128-lane
        boundaries -> lhs (ho, (K+1)*128).  The host-packed rhs emits all four
        2x2-pool phases in the 256 output lanes (p in the two 128-lane halves,
        dw at lane offset 64 inside each half).
        """
        parts = [plane_ref[pl.ds(j, ho, stride=2), :] for j in range(k + 1)]
        lhs = jnp.concatenate(parts, axis=1).astype(jnp.bfloat16)
        out = jnp.dot(lhs, rhs_ref[...], preferred_element_type=jnp.float32)   # (ho, 256)
        vmax = jnp.maximum(out[:, :128], out[:, 128:])                         # vertical pool (p)
        pooled = jnp.maximum(vmax, pltpu.roll(vmax, shift=64, axis=1))         # horizontal pool (dw)
        # bias is per-channel, so adding it after the max is equivalent; padded
        # bias lanes are zero so the zero/junk lanes stay harmless after ReLU.
        return jnp.maximum(pooled + bias_ref[...], 0.0)                        # (ho, 128)

    zrow = jnp.zeros((1, 128), jnp.float32)

    # block 1: Conv(1->4, k5, p2) -> MaxPool2 -> ReLU : 28x28 -> (14, 128) [lane = ow*4 + co]
    a1 = conv_pool_relu(plane1_ref, rhs1_ref, cb1_ref, 5, 14)
    plane2_ref[0:1, :] = zrow            # top pad row only
    plane2_ref[1:15, :] = a1             # one contiguous block store
    plane2_ref[15:16, :] = zrow          # bottom pad row only

    # block 2: Conv(4->8, k3, p1) -> MaxPool2 -> ReLU : -> (7, 128) [lane = ow*8 + co]
    a2 = conv_pool_relu(plane2_ref, rhs2_ref, cb2_ref, 3, 7)
    plane3_ref[0:1, :] = zrow
    plane3_ref[1:8, :] = a2
    plane3_ref[8:9, :] = zrow

    # block 3: Conv(8->16, k3, p1) -> MaxPool2 -> ReLU : -> (3, 128) [lane = ow*16 + co]
    a3 = conv_pool_relu(plane3_ref, rhs3_ref, cb3_ref, 3, 3)

    # Flatten (PyTorch channel-major order folded into w1p rows) + Linear(144,64) + Tanh.
    lhs_l1 = jnp.concatenate([a3[0:1, :], a3[1:2, :], a3[2:3, :]], axis=1)     # (1, 384)
    h = jnp.dot(lhs_l1.astype(jnp.bfloat16), w1p_ref[...],
                preferred_element_type=jnp.float32) + lb1_ref[...]
    h = jnp.tanh(h)                                       # padded lanes: tanh(0) = 0

    # Linear(64,10) + Softmax(dim=1).  Padded logit lanes carry a -1e30 bias so
    # exp() kills them and the 128-lane reductions equal the 10-lane ones.
    z = jnp.dot(h.astype(jnp.bfloat16), w2t_ref[...],
                preferred_element_type=jnp.float32) + lb2_ref[...]
    z = z - jnp.max(z, axis=-1, keepdims=True)
    e = jnp.exp(z)
    o_ref[...] = e / jnp.sum(e, axis=-1, keepdims=True)


# ---------------------------------------------------------------------------
# Host-side one-time parameter packing (pure numpy on concrete params)
# ---------------------------------------------------------------------------
def _pack_conv_rhs(w_oihw, pad, w_in):
    """(Cout,Cin,K,K) conv weight -> ((K+1)*128, 256) bf16 GEMM rhs.

    Row index    : j*128 + wi*Cin + ci  (j = padded-row offset of the im2row lhs,
                                         wi = unpadded input column, channel-minor)
    Column index : p*128 + dw*64 + ow*Cout + co  (p / dw = 2x2-pool phases)
    Rows for lanes >= W*Cin inside each j-block stay zero, so junk lanes of the
    previous 128-wide activation cannot leak in; W-edge zero padding is folded
    in by dropping out-of-range taps.
    """
    w = np.asarray(w_oihw, np.float32)
    cout, cin, k, _ = w.shape
    wo = w_in // 2
    rhs = np.zeros(((k + 1) * 128, 256), np.float32)
    for j in range(k + 1):
        for p in range(2):
            kh = j - p
            if not 0 <= kh < k:
                continue
            for dw in range(2):
                for ow in range(wo):
                    for kw in range(k):
                        wi = 2 * ow + dw + kw - pad
                        if 0 <= wi < w_in:
                            rhs[j * 128 + wi * cin:j * 128 + (wi + 1) * cin,
                                p * 128 + dw * 64 + ow * cout:
                                p * 128 + dw * 64 + (ow + 1) * cout] = w[:, :, kh, kw].T
    return jnp.asarray(rhs, jnp.bfloat16)


def _pack_conv_bias(b, wo):
    b = np.asarray(b, np.float32)
    cb = np.zeros((1, 128), np.float32)
    cb[0, :wo * b.shape[0]] = np.tile(b, wo)
    return jnp.asarray(cb)


def pack_params(convs, lin):
    packed = {}
    for idx, ((w, b), (_, _, _, pad, hin)) in enumerate(zip(convs, CONV_CFG), start=1):
        packed[f"rhs{idx}"] = _pack_conv_rhs(w, pad, hin)
        packed[f"cb{idx}"] = _pack_conv_bias(b, hin // 2)

    w1, b1, w2, b2 = lin
    # PyTorch Flatten on NCHW is channel-major (c, h, w); our activation lanes
    # are (w*16 + c) per row h -> permute w1 columns, pad 64 outputs to 128.
    w1r = np.asarray(w1, np.float32).reshape(64, 16, 3, 3)         # (j, c, h, w)
    w1p = np.zeros((384, 128), np.float32)
    for h in range(3):
        for wcol in range(3):
            w1p[h * 128 + wcol * 16:h * 128 + (wcol + 1) * 16, :64] = w1r[:, :, h, wcol].T
    packed["w1p"] = jnp.asarray(w1p, jnp.bfloat16)

    lb1 = np.zeros((1, 128), np.float32)
    lb1[0, :64] = np.asarray(b1, np.float32)
    packed["lb1"] = jnp.asarray(lb1)

    w2t = np.zeros((128, 128), np.float32)
    w2t[:64, :10] = np.asarray(w2, np.float32).T
    packed["w2t"] = jnp.asarray(w2t, jnp.bfloat16)

    lb2 = np.full((1, 128), -1e30, np.float32)                     # kill padded logit lanes
    lb2[0, :10] = np.asarray(b2, np.float32)
    packed["lb2"] = jnp.asarray(lb2)
    return packed


# ---------------------------------------------------------------------------
# Forward pass: tiny input prep + one pallas_call
# ---------------------------------------------------------------------------
_VMEM = pl.BlockSpec(memory_space=pltpu.MemorySpace.VMEM)

_COST = pl.CostEstimate(
    flops=2 * (14 * 768 * 256 + 7 * 512 * 256 + 3 * 512 * 256 + 384 * 128 + 128 * 128),
    transcendentals=256,
    bytes_accessed=((768 + 512 + 512) * 256 + 384 * 128 + 128 * 128) * 2    # bf16 weights
                   + (32 * 128 + 6 * 128 + 128) * 4,                        # f32 plane/bias/out
)


@jax.jit
def forward(x_nchw, packed):
    """Forward pass matching `inference()` (batch == 1, 1x1x28x28 input)."""
    # H-pad (pad=2) the image into a lane-dense (32, 128) plane (lane = column).
    img = x_nchw[0, 0].astype(jnp.float32)
    plane1 = jnp.zeros((32, 128), jnp.float32).at[2:30, :28].set(img)

    args = (plane1,
            packed["rhs1"], packed["rhs2"], packed["rhs3"],
            packed["cb1"], packed["cb2"], packed["cb3"],
            packed["w1p"], packed["lb1"], packed["w2t"], packed["lb2"])
    out = pl.pallas_call(
        fused_forward_kernel,
        out_shape=jax.ShapeDtypeStruct((1, 128), jnp.float32),
        in_specs=[_VMEM] * len(args),
        out_specs=_VMEM,
        scratch_shapes=[pltpu.VMEM((16, 128), jnp.float32),   # H-padded layer-2 input plane
                        pltpu.VMEM((16, 128), jnp.float32)],  # H-padded layer-3 input plane
        cost_estimate=_COST,
    )(*args)
    return out[:, :10]


# ---------------------------------------------------------------------------
# Deterministic parameters (xavier-normal weights / zero biases, like the module)
# ---------------------------------------------------------------------------
def init_params(key):
    def xavier(k_, shape, fan_in, fan_out):
        std = np.sqrt(2.0 / (fan_in + fan_out))
        return jax.random.normal(k_, shape, jnp.float32) * jnp.float32(std)

    ks = jax.random.split(key, 5)
    convs = []
    for k_, (cin, cout, ksz, _, _) in zip(ks[:3], CONV_CFG):
        w = xavier(k_, (cout, cin, ksz, ksz), cin * ksz * ksz, cout * ksz * ksz)
        convs.append((w, jnp.zeros((cout,), jnp.float32)))
    w1 = xavier(ks[3], (64, 144), 144, 64)
    w2 = xavier(ks[4], (10, 64), 64, 10)
    return convs, (w1, jnp.zeros((64,), jnp.float32), w2, jnp.zeros((10,), jnp.float32))


# ---------------------------------------------------------------------------
# Pure-JAX f32 reference (matches the PyTorch module semantics)
# ---------------------------------------------------------------------------
def reference_forward(x_nchw, convs, lin):
    a = x_nchw.astype(jnp.float32)
    for (w, b), (_, _, _, pad, _) in zip(convs, CONV_CFG):
        a = lax.conv_general_dilated(
            a, w, (1, 1), [(pad, pad), (pad, pad)],
            dimension_numbers=("NCHW", "OIHW", "NCHW"),
            precision=_HI) + b[None, :, None, None]
        a = lax.reduce_window(a, -jnp.inf, lax.max, (1, 1, 2, 2), (1, 1, 2, 2), "VALID")
        a = jnp.maximum(a, 0.0)
    w1, b1, w2, b2 = lin
    flat = a.reshape(a.shape[0], -1)
    h = jnp.tanh(jnp.dot(flat, w1.T, precision=_HI) + b1)
    z = jnp.dot(h, w2.T, precision=_HI) + b2
    return jax.nn.softmax(z, axis=1)


if __name__ == "__main__":
    key = jax.random.PRNGKey(0)
    kx, kp = jax.random.split(key)
    # like `inference`: x = data.view(1, 1, 28, 28)
    x = jax.random.normal(kx, (1, 1, 28, 28), jnp.float32)
    convs, lin = init_params(kp)
    packed = pack_params(convs, lin)

    y = jax.block_until_ready(forward(x, packed))
    y_ref = jax.block_until_ready(reference_forward(x, convs, lin))

    assert y.shape == (1, 10), y.shape
    err = float(np.max(np.abs(np.asarray(y) - np.asarray(y_ref))))
    # Kernel uses single-pass bf16 MXU (per perf review) -> bf16-appropriate
    # tolerance against the f32 reference; also sanity-check the softmax sums to 1.
    assert err < 2e-2, err
    assert abs(float(np.sum(np.asarray(y))) - 1.0) < 1e-3
    print("KERNEL_OK")
</pallas_src>

<mosaic_0001>
module attributes {stable_mosaic.version = 11 : i64} {
  func.func @fused_forward_kernel(%arg0: memref<32x128xf32, #tpu.memory_space<vmem>>, %arg1: memref<768x256xbf16, #tpu.memory_space<vmem>>, %arg2: memref<512x256xbf16, #tpu.memory_space<vmem>>, %arg3: memref<512x256xbf16, #tpu.memory_space<vmem>>, %arg4: memref<1x128xf32, #tpu.memory_space<vmem>>, %arg5: memref<1x128xf32, #tpu.memory_space<vmem>>, %arg6: memref<1x128xf32, #tpu.memory_space<vmem>>, %arg7: memref<384x128xbf16, #tpu.memory_space<vmem>>, %arg8: memref<1x128xf32, #tpu.memory_space<vmem>>, %arg9: memref<128x128xbf16, #tpu.memory_space<vmem>>, %arg10: memref<1x128xf32, #tpu.memory_space<vmem>>, %arg11: memref<1x128xf32, #tpu.memory_space<vmem>>, %arg12: memref<16x128xf32, #tpu.memory_space<vmem>>, %arg13: memref<16x128xf32, #tpu.memory_space<vmem>>) attributes {dimension_semantics = [], scalar_prefetch = 0 : i64, scratch_operands = 2 : i64, tpu.core_type = #tpu.core_type<tc>} {
    %cst = arith.constant 0.000000e+00 : f32
    %0 = vector.broadcast %cst : f32 to vector<1x128xf32>
    %c0 = arith.constant 0 : index
    %c0_0 = arith.constant 0 : index
    %1 = tpu.strided_load %arg0[%c0, %c0_0] {strides = array<i32: 2, 1>} : memref<32x128xf32, #tpu.memory_space<vmem>>, vector<14x128xf32>
    %c1 = arith.constant 1 : index
    %c0_1 = arith.constant 0 : index
    %2 = tpu.strided_load %arg0[%c1, %c0_1] {strides = array<i32: 2, 1>} : memref<32x128xf32, #tpu.memory_space<vmem>>, vector<14x128xf32>
    %c2 = arith.constant 2 : index
    %c0_2 = arith.constant 0 : index
    %3 = tpu.strided_load %arg0[%c2, %c0_2] {strides = array<i32: 2, 1>} : memref<32x128xf32, #tpu.memory_space<vmem>>, vector<14x128xf32>
    %c3 = arith.constant 3 : index
    %c0_3 = arith.constant 0 : index
    %4 = tpu.strided_load %arg0[%c3, %c0_3] {strides = array<i32: 2, 1>} : memref<32x128xf32, #tpu.memory_space<vmem>>, vector<14x128xf32>
    %c4 = arith.constant 4 : index
    %c0_4 = arith.constant 0 : index
    %5 = tpu.strided_load %arg0[%c4, %c0_4] {strides = array<i32: 2, 1>} : memref<32x128xf32, #tpu.memory_space<vmem>>, vector<14x128xf32>
    %c5 = arith.constant 5 : index
    %c0_5 = arith.constant 0 : index
    %6 = tpu.strided_load %arg0[%c5, %c0_5] {strides = array<i32: 2, 1>} : memref<32x128xf32, #tpu.memory_space<vmem>>, vector<14x128xf32>
    %7 = tpu.concatenate %1, %2, %3, %4, %5, %6 in 1 : vector<14x128xf32>, vector<14x128xf32>, vector<14x128xf32>, vector<14x128xf32>, vector<14x128xf32>, vector<14x128xf32> -> vector<14x768xf32>
    %8 = arith.truncf %7 : vector<14x768xf32> to vector<14x768xbf16>
    %c0_6 = arith.constant 0 : index
    %c0_7 = arith.constant 0 : index
    %9 = vector.load %arg1[%c0_6, %c0_7] : memref<768x256xbf16, #tpu.memory_space<vmem>>, vector<768x256xbf16>
    %cst_8 = arith.constant dense<0.000000e+00> : vector<14x256xf32>
    %10 = tpu.matmul %8, %9, %cst_8 {dimension_numbers = #tpu.dot_dimension_numbers<[1], [0], [0], [1], [0, 0, 1, 1], [], []>} : vector<14x768xbf16>, vector<768x256xbf16>, vector<14x256xf32> -> vector<14x256xf32>
    %11 = vector.extract_strided_slice %10 {offsets = [0, 0], sizes = [14, 128], strides = [1, 1]} : vector<14x256xf32> to vector<14x128xf32>
    %12 = vector.extract_strided_slice %10 {offsets = [0, 128], sizes = [14, 128], strides = [1, 1]} : vector<14x256xf32> to vector<14x128xf32>
    %13 = arith.maximumf %11, %12 : vector<14x128xf32>
    %c64_i32 = arith.constant 64 : i32
    %14 = tpu.dynamic_rotate %13 by %c64_i32 dim 1 : vector<14x128xf32>, i32 -> vector<14x128xf32>
    %15 = arith.maximumf %13, %14 : vector<14x128xf32>
    %c0_9 = arith.constant 0 : index
    %c0_10 = arith.constant 0 : index
    %16 = vector.load %arg4[%c0_9, %c0_10] : memref<1x128xf32, #tpu.memory_space<vmem>>, vector<1x128xf32>
    %17 = vector.broadcast %16 : vector<1x128xf32> to vector<14x128xf32>
    %18 = arith.addf %15, %17 : vector<14x128xf32>
    %cst_11 = arith.constant 0.000000e+00 : f32
    %19 = vector.broadcast %cst_11 : f32 to vector<14x128xf32>
    %20 = arith.maximumf %18, %19 : vector<14x128xf32>
    %c0_12 = arith.constant 0 : index
    %c0_13 = arith.constant 0 : index
    %21 = vector.load %arg12[%c0_12, %c0_13] : memref<16x128xf32, #tpu.memory_space<vmem>>, vector<1x128xf32>
    tpu.vector_store %arg12[%c0_12, %c0_13], %0 {strides = array<i32>} : memref<16x128xf32, #tpu.memory_space<vmem>>, vector<1x128xf32>,
    %c1_14 = arith.constant 1 : index
    %c0_15 = arith.constant 0 : index
    %22 = vector.load %arg12[%c1_14, %c0_15] : memref<16x128xf32, #tpu.memory_space<vmem>>, vector<14x128xf32>
    tpu.vector_store %arg12[%c1_14, %c0_15], %20 {strides = array<i32>} : memref<16x128xf32, #tpu.memory_space<vmem>>, vector<14x128xf32>,
    %c15 = arith.constant 15 : index
    %c0_16 = arith.constant 0 : index
    %23 = vector.load %arg12[%c15, %c0_16] : memref<16x128xf32, #tpu.memory_space<vmem>>, vector<1x128xf32>
    tpu.vector_store %arg12[%c15, %c0_16], %0 {strides = array<i32>} : memref<16x128xf32, #tpu.memory_space<vmem>>, vector<1x128xf32>,
    %c0_17 = arith.constant 0 : index
    %c0_18 = arith.constant 0 : index
    %24 = tpu.strided_load %arg12[%c0_17, %c0_18] {strides = array<i32: 2, 1>} : memref<16x128xf32, #tpu.memory_space<vmem>>, vector<7x128xf32>
    %c1_19 = arith.constant 1 : index
    %c0_20 = arith.constant 0 : index
    %25 = tpu.strided_load %arg12[%c1_19, %c0_20] {strides = array<i32: 2, 1>} : memref<16x128xf32, #tpu.memory_space<vmem>>, vector<7x128xf32>
    %c2_21 = arith.constant 2 : index
    %c0_22 = arith.constant 0 : index
    %26 = tpu.strided_load %arg12[%c2_21, %c0_22] {strides = array<i32: 2, 1>} : memref<16x128xf32, #tpu.memory_space<vmem>>, vector<7x128xf32>
    %c3_23 = arith.constant 3 : index
    %c0_24 = arith.constant 0 : index
    %27 = tpu.strided_load %arg12[%c3_23, %c0_24] {strides = array<i32: 2, 1>} : memref<16x128xf32, #tpu.memory_space<vmem>>, vector<7x128xf32>
    %28 = tpu.concatenate %24, %25, %26, %27 in 1 : vector<7x128xf32>, vector<7x128xf32>, vector<7x128xf32>, vector<7x128xf32> -> vector<7x512xf32>
    %29 = arith.truncf %28 : vector<7x512xf32> to vector<7x512xbf16>
    %c0_25 = arith.constant 0 : index
    %c0_26 = arith.constant 0 : index
    %30 = vector.load %arg2[%c0_25, %c0_26] : memref<512x256xbf16, #tpu.memory_space<vmem>>, vector<512x256xbf16>
    %cst_27 = arith.constant dense<0.000000e+00> : vector<7x256xf32>
    %31 = tpu.matmul %29, %30, %cst_27 {dimension_numbers = #tpu.dot_dimension_numbers<[1], [0], [0], [1], [0, 0, 1, 1], [], []>} : vector<7x512xbf16>, vector<512x256xbf16>, vector<7x256xf32> -> vector<7x256xf32>
    %32 = vector.extract_strided_slice %31 {offsets = [0, 0], sizes = [7, 128], strides = [1, 1]} : vector<7x256xf32> to vector<7x128xf32>
    %33 = vector.extract_strided_slice %31 {offsets = [0, 128], sizes = [7, 128], strides = [1, 1]} : vector<7x256xf32> to vector<7x128xf32>
    %34 = arith.maximumf %32, %33 : vector<7x128xf32>
    %c64_i32_28 = arith.constant 64 : i32
    %35 = tpu.dynamic_rotate %34 by %c64_i32_28 dim 1 : vector<7x128xf32>, i32 -> vector<7x128xf32>
    %36 = arith.maximumf %34, %35 : vector<7x128xf32>
    %c0_29 = arith.constant 0 : index
    %c0_30 = arith.constant 0 : index
    %37 = vector.load %arg5[%c0_29, %c0_30] : memref<1x128xf32, #tpu.memory_space<vmem>>, vector<1x128xf32>
    %38 = vector.broadcast %37 : vector<1x128xf32> to vector<7x128xf32>
    %39 = arith.addf %36, %38 : vector<7x128xf32>
    %cst_31 = arith.constant 0.000000e+00 : f32
    %40 = vector.broadcast %cst_31 : f32 to vector<7x128xf32>
    %41 = arith.maximumf %39, %40 : vector<7x128xf32>
    %c0_32 = arith.constant 0 : index
    %c0_33 = arith.constant 0 : index
    %42 = vector.load %arg13[%c0_32, %c0_33] : memref<16x128xf32, #tpu.memory_space<vmem>>, vector<1x128xf32>
    tpu.vector_store %arg13[%c0_32, %c0_33], %0 {strides = array<i32>} : memref<16x128xf32, #tpu.memory_space<vmem>>, vector<1x128xf32>,
    %c1_34 = arith.constant 1 : index
    %c0_35 = arith.constant 0 : index
    %43 = vector.load %arg13[%c1_34, %c0_35] : memref<16x128xf32, #tpu.memory_space<vmem>>, vector<7x128xf32>
    tpu.vector_store %arg13[%c1_34, %c0_35], %41 {strides = array<i32>} : memref<16x128xf32, #tpu.memory_space<vmem>>, vector<7x128xf32>,
    %c8 = arith.constant 8 : index
    %c0_36 = arith.constant 0 : index
    %44 = vector.load %arg13[%c8, %c0_36] : memref<16x128xf32, #tpu.memory_space<vmem>>, vector<1x128xf32>
    tpu.vector_store %arg13[%c8, %c0_36], %0 {strides = array<i32>} : memref<16x128xf32, #tpu.memory_space<vmem>>, vector<1x128xf32>,
    %c0_37 = arith.constant 0 : index
    %c0_38 = arith.constant 0 : index
    %45 = tpu.strided_load %arg13[%c0_37, %c0_38] {strides = array<i32: 2, 1>} : memref<16x128xf32, #tpu.memory_space<vmem>>, vector<3x128xf32>
    %c1_39 = arith.constant 1 : index
    %c0_40 = arith.constant 0 : index
    %46 = tpu.strided_load %arg13[%c1_39, %c0_40] {strides = array<i32: 2, 1>} : memref<16x128xf32, #tpu.memory_space<vmem>>, vector<3x128xf32>
    %c2_41 = arith.constant 2 : index
    %c0_42 = arith.constant 0 : index
    %47 = tpu.strided_load %arg13[%c2_41, %c0_42] {strides = array<i32: 2, 1>} : memref<16x128xf32, #tpu.memory_space<vmem>>, vector<3x128xf32>
    %c3_43 = arith.constant 3 : index
    %c0_44 = arith.constant 0 : index
    %48 = tpu.strided_load %arg13[%c3_43, %c0_44] {strides = array<i32: 2, 1>} : memref<16x128xf32, #tpu.memory_space<vmem>>, vector<3x128xf32>
    %49 = tpu.concatenate %45, %46, %47, %48 in 1 : vector<3x128xf32>, vector<3x128xf32>, vector<3x128xf32>, vector<3x128xf32> -> vector<3x512xf32>
    %50 = arith.truncf %49 : vector<3x512xf32> to vector<3x512xbf16>
    %c0_45 = arith.constant 0 : index
    %c0_46 = arith.constant 0 : index
    %51 = vector.load %arg3[%c0_45, %c0_46] : memref<512x256xbf16, #tpu.memory_space<vmem>>, vector<512x256xbf16>
    %cst_47 = arith.constant dense<0.000000e+00> : vector<3x256xf32>
    %52 = tpu.matmul %50, %51, %cst_47 {dimension_numbers = #tpu.dot_dimension_numbers<[1], [0], [0], [1], [0, 0, 1, 1], [], []>} : vector<3x512xbf16>, vector<512x256xbf16>, vector<3x256xf32> -> vector<3x256xf32>
    %53 = vector.extract_strided_slice %52 {offsets = [0, 0], sizes = [3, 128], strides = [1, 1]} : vector<3x256xf32> to vector<3x128xf32>
    %54 = vector.extract_strided_slice %52 {offsets = [0, 128], sizes = [3, 128], strides = [1, 1]} : vector<3x256xf32> to vector<3x128xf32>
    %55 = arith.maximumf %53, %54 : vector<3x128xf32>
    %c64_i32_48 = arith.constant 64 : i32
    %56 = tpu.dynamic_rotate %55 by %c64_i32_48 dim 1 : vector<3x128xf32>, i32 -> vector<3x128xf32>
    %57 = arith.maximumf %55, %56 : vector<3x128xf32>
    %c0_49 = arith.constant 0 : index
    %c0_50 = arith.constant 0 : index
    %58 = vector.load %arg6[%c0_49, %c0_50] : memref<1x128xf32, #tpu.memory_space<vmem>>, vector<1x128xf32>
    %59 = vector.broadcast %58 : vector<1x128xf32> to vector<3x128xf32>
    %60 = arith.addf %57, %59 : vector<3x128xf32>
    %cst_51 = arith.constant 0.000000e+00 : f32
    %61 = vector.broadcast %cst_51 : f32 to vector<3x128xf32>
    %62 = arith.maximumf %60, %61 : vector<3x128xf32>
    %63 = vector.extract_strided_slice %62 {offsets = [0, 0], sizes = [1, 128], strides = [1, 1]} : vector<3x128xf32> to vector<1x128xf32>
    %64 = vector.extract_strided_slice %62 {offsets = [1, 0], sizes = [1, 128], strides = [1, 1]} : vector<3x128xf32> to vector<1x128xf32>
    %65 = vector.extract_strided_slice %62 {offsets = [2, 0], sizes = [1, 128], strides = [1, 1]} : vector<3x128xf32> to vector<1x128xf32>
    %66 = tpu.concatenate %63, %64, %65 in 1 : vector<1x128xf32>, vector<1x128xf32>, vector<1x128xf32> -> vector<1x384xf32>
    %67 = arith.truncf %66 : vector<1x384xf32> to vector<1x384xbf16>
    %c0_52 = arith.constant 0 : index
    %c0_53 = arith.constant 0 : index
    %68 = vector.load %arg7[%c0_52, %c0_53] : memref<384x128xbf16, #tpu.memory_space<vmem>>, vector<384x128xbf16>
    %cst_54 = arith.constant dense<0.000000e+00> : vector<1x128xf32>
    %69 = tpu.matmul %67, %68, %cst_54 {dimension_numbers = #tpu.dot_dimension_numbers<[1], [0], [0], [1], [0, 0, 1, 1], [], []>} : vector<1x384xbf16>, vector<384x128xbf16>, vector<1x128xf32> -> vector<1x128xf32>
    %c0_55 = arith.constant 0 : index
    %c0_56 = arith.constant 0 : index
    %70 = vector.load %arg8[%c0_55, %c0_56] : memref<1x128xf32, #tpu.memory_space<vmem>>, vector<1x128xf32>
    %71 = arith.addf %69, %70 : vector<1x128xf32>
    %72 = math.tanh %71 : vector<1x128xf32>
    %73 = arith.truncf %72 : vector<1x128xf32> to vector<1x128xbf16>
    %c0_57 = arith.constant 0 : index
    %c0_58 = arith.constant 0 : index
    %74 = vector.load %arg9[%c0_57, %c0_58] : memref<128x128xbf16, #tpu.memory_space<vmem>>, vector<128x128xbf16>
    %cst_59 = arith.constant dense<0.000000e+00> : vector<1x128xf32>
    %75 = tpu.matmul %73, %74, %cst_59 {dimension_numbers = #tpu.dot_dimension_numbers<[1], [0], [0], [1], [0, 0, 1, 1], [], []>} : vector<1x128xbf16>, vector<128x128xbf16>, vector<1x128xf32> -> vector<1x128xf32>
    %c0_60 = arith.constant 0 : index
    %c0_61 = arith.constant 0 : index
    %76 = vector.load %arg10[%c0_60, %c0_61] : memref<1x128xf32, #tpu.memory_space<vmem>>, vector<1x128xf32>
    %77 = arith.addf %75, %76 : vector<1x128xf32>
    %cst_62 = arith.constant dense<0xFF800000> : vector<1xf32>
    %78 = vector.multi_reduction <maximumf>, %77, %cst_62 [1] : vector<1x128xf32> to vector<1xf32>
    %79 = vector.shape_cast %78 : vector<1xf32> to vector<1x1xf32>
    %80 = vector.broadcast %79 : vector<1x1xf32> to vector<1x128xf32>
    %81 = arith.subf %77, %80 : vector<1x128xf32>
    %82 = math.exp %81 : vector<1x128xf32>
    %cst_63 = arith.constant dense<0.000000e+00> : vector<1xf32>
    %83 = vector.multi_reduction <add>, %82, %cst_63 [1] : vector<1x128xf32> to vector<1xf32>
    %84 = vector.shape_cast %83 : vector<1xf32> to vector<1x1xf32>
    %85 = vector.broadcast %84 : vector<1x1xf32> to vector<1x128xf32>
    %86 = arith.divf %82, %85 : vector<1x128xf32>
    %c0_64 = arith.constant 0 : index
    %c0_65 = arith.constant 0 : index
    %87 = vector.load %arg11[%c0_64, %c0_65] : memref<1x128xf32, #tpu.memory_space<vmem>>, vector<1x128xf32>
    tpu.vector_store %arg11[%c0_64, %c0_65], %86 {strides = array<i32>} : memref<1x128xf32, #tpu.memory_space<vmem>>, vector<1x128xf32>,
    return
  }
}

</mosaic_0001>

<llo_original>
// kernel: forward.1
$region0: #{forward.1}
  #allocation0 [shape = 'u32[]', space=smem, size = 0x4, offset = 0x4, fixed_abs, tag = 'smem constant byte address 0x4 - core index']
  #allocation1 [shape = 'u32[72,128]{1,0:T(1,128)}', space=vmem, size = 0x9000, scoped, tag = 'internal scratch']
  #allocation2 [shape = 'f32[16,128]{1,0:T(8,128)}', space=vmem, size = 0x2000, scoped, tag = 'scratch operand']
  #allocation3 [shape = 'f32[16,128]{1,0:T(8,128)}', space=vmem, size = 0x2000, scoped, tag = 'scratch operand']
  %s0 = inlined_call_operand.vmem [shape: f32[32,128], index: 0, kind: input, shape index: {}]
  %s1 = inlined_call_operand.hbm [shape: bf16[768,256], index: 1, kind: input, shape index: {}]
  %s2 = inlined_call_operand.hbm [shape: bf16[512,256], index: 2, kind: input, shape index: {}]
  %s3 = inlined_call_operand.hbm [shape: bf16[512,256], index: 3, kind: input, shape index: {}]
  %s4 = inlined_call_operand.vmem [shape: f32[1,128], index: 4, kind: input, shape index: {}]
  %s5 = inlined_call_operand.vmem [shape: f32[1,128], index: 5, kind: input, shape index: {}]
  %s6 = inlined_call_operand.vmem [shape: f32[1,128], index: 6, kind: input, shape index: {}]
  %s7 = inlined_call_operand.hbm [shape: bf16[384,128], index: 7, kind: input, shape index: {}]
  %s8 = inlined_call_operand.vmem [shape: f32[1,128], index: 8, kind: input, shape index: {}]
  %s9 = inlined_call_operand.vmem [shape: bf16[128,128], index: 9, kind: input, shape index: {}]
  %s10 = inlined_call_operand.vmem [shape: f32[1,128], index: 10, kind: input, shape index: {}]
  %s11 = inlined_call_operand.hbm [shape: f32[1,128], index: 11, kind: output, shape index: {}]
  %s12 = sld [smem:[#allocation0]]
  $region70: #{forward.1} parent=0
    _
  %s14 = ssub.s32 1, %s12
  %s15 = scalar_select 0, %s14, %s12
  $region1: #{forward.1} parent=0
    #allocation4 [shape = 'u8[393216]{0}', space=vmem, size = 0x60000, scoped, tag = 'input window, operand 1, single buffered']
    #allocation5 [shape = 's32[1]{0}', space=sflag, size = 0x4, scoped, tag = 'scoped memory for forward.1']
    #allocation6 [shape = 's32[1]{0}', space=sflag, size = 0x4, scoped, tag = 'scoped memory for forward.1']
    #allocation7 [shape = 'u8[262144]{0}', space=vmem, size = 0x40000, scoped, tag = 'input window, operand 2, single buffered']
    #allocation8 [shape = 's32[1]{0}', space=sflag, size = 0x4, scoped, tag = 'scoped memory for forward.1']
    #allocation9 [shape = 'u8[262144]{0}', space=vmem, size = 0x40000, scoped, tag = 'input window, operand 3, single buffered']
    #allocation10 [shape = 'u8[98304]{0}', space=vmem, size = 0x18000, scoped, tag = 'input window, operand 7, single buffered']
    #allocation11 [shape = 's32[1]{0}', space=sflag, size = 0x4, scoped, tag = 'scoped memory for forward.1']
    #allocation12 [shape = 'u8[512]{0}', space=vmem, size = 0x400, scoped, tag = 'output window, operand 0, single buffered']
    %16 = vsyncpa [#allocation5], 0
    %17 = vsyncpa [#allocation8], 0
    %18 = vsyncpa [#allocation11], 0
    %19 = vsyncpa [#allocation6], 0
    // Predicated region
    $region2: #{forward.1} parent=1 // pred_check
      _
    $region3: #{forward.1} parent=1 // pred_check_branch
      %21 = sbr.rel (0) target = $region5
    $region4: #{forward.1} parent=1 // pred_region
      _
    $region5: #{forward.1} parent=1 // pred_fallthru
      _
    // Predicated region
    $region6: #{forward.1} parent=1 // pred_check
      _
    $region7: #{forward.1} parent=1 // pred_check_branch
      %23 = sbr.rel (0) target = $region9
    $region8: #{forward.1} parent=1 // pred_region
      %25 = vsyncadd [#allocation5], 0
      %s26 = sshll.u32 %s1, 4
      %s27 = int_to_ptr.hbm [resolvable:$true] %s26
      %s28 = sshll.u32 [#allocation4], 4
      %s29 = int_to_ptr.vmem [resolvable:$true] %s28
      %34 = dma.hbm_to_vmem [thread:$0]  %s27, 12288, %s29, [#allocation5], 128, 128, 8
    $region9: #{forward.1} parent=1 // pred_fallthru
      _
    // Predicated region
    $region10: #{forward.1} parent=1 // pred_check
      _
    $region11: #{forward.1} parent=1 // pred_check_branch
      %36 = sbr.rel (0) target = $region13
    $region12: #{forward.1} parent=1 // pred_region
      %38 = vsyncadd [#allocation8], 0
      %s39 = sshll.u32 %s2, 4
      %s40 = int_to_ptr.hbm [resolvable:$true] %s39
      %s41 = sshll.u32 [#allocation7], 4
      %s42 = int_to_ptr.vmem [resolvable:$true] %s41
      %47 = dma.hbm_to_vmem [thread:$0]  %s40, 8192, %s42, [#allocation8], 128, 128, 8
    $region13: #{forward.1} parent=1 // pred_fallthru
      _
    // Predicated region
    $region14: #{forward.1} parent=1 // pred_check
      _
    $region15: #{forward.1} parent=1 // pred_check_branch
      %49 = sbr.rel (0) target = $region17
    $region16: #{forward.1} parent=1 // pred_region
      %51 = vsyncadd [#allocation8], 0
      %s52 = sshll.u32 %s3, 4
      %s53 = int_to_ptr.hbm [resolvable:$true] %s52
      %s54 = sshll.u32 [#allocation9], 4
      %s55 = int_to_ptr.vmem [resolvable:$true] %s54
      %60 = dma.hbm_to_vmem [thread:$0]  %s53, 8192, %s55, [#allocation8], 128, 128, 8
    $region17: #{forward.1} parent=1 // pred_fallthru
      _
    // Predicated region
    $region18: #{forward.1} parent=1 // pred_check
      _
    $region19: #{forward.1} parent=1 // pred_check_branch
      %62 = sbr.rel (0) target = $region21
    $region20: #{forward.1} parent=1 // pred_region
      _
    $region21: #{forward.1} parent=1 // pred_fallthru
      _
    // Predicated region
    $region22: #{forward.1} parent=1 // pred_check
      _
    $region23: #{forward.1} parent=1 // pred_check_branch
      %64 = sbr.rel (0) target = $region25
    $region24: #{forward.1} parent=1 // pred_region
      _
    $region25: #{forward.1} parent=1 // pred_fallthru
      _
    // Predicated region
    $region26: #{forward.1} parent=1 // pred_check
      _
    $region27: #{forward.1} parent=1 // pred_check_branch
      %66 = sbr.rel (0) target = $region29
    $region28: #{forward.1} parent=1 // pred_region
      _
    $region29: #{forward.1} parent=1 // pred_fallthru
      _
    // Predicated region
    $region30: #{forward.1} parent=1 // pred_check
      _
    $region31: #{forward.1} parent=1 // pred_check_branch
      %68 = sbr.rel (0) target = $region33
    $region32: #{forward.1} parent=1 // pred_region
      %70 = vsyncadd [#allocation11], 0
      %s71 = sshll.u32 %s7, 4
      %s72 = int_to_ptr.hbm [resolvable:$true] %s71
      %s73 = sshll.u32 [#allocation10], 4
      %s74 = int_to_ptr.vmem [resolvable:$true] %s73
      %79 = dma.hbm_to_vmem [thread:$0]  %s72, 3072, %s74, [#allocation11], 64, 64, 4
    $region33: #{forward.1} parent=1 // pred_fallthru
      _
    // Predicated region
    $region34: #{forward.1} parent=1 // pred_check
      _
    $region35: #{forward.1} parent=1 // pred_check_branch
      %81 = sbr.rel (0) target = $region37
    $region36: #{forward.1} parent=1 // pred_region
      _
    $region37: #{forward.1} parent=1 // pred_fallthru
      _
    // Predicated region
    $region38: #{forward.1} parent=1 // pred_check
      _
    $region39: #{forward.1} parent=1 // pred_check_branch
      %83 = sbr.rel (0) target = $region41
    $region40: #{forward.1} parent=1 // pred_region
      _
    $region41: #{forward.1} parent=1 // pred_fallthru
      _
    // Predicated region
    $region42: #{forward.1} parent=1 // pred_check
      _
    $region43: #{forward.1} parent=1 // pred_check_branch
      %85 = sbr.rel (0) target = $region45
    $region44: #{forward.1} parent=1 // pred_region
      _
    $region45: #{forward.1} parent=1 // pred_fallthru
      _
    // Predicated region
    $region46: #{forward.1} parent=1 // pred_check
      _
    $region47: #{forward.1} parent=1 // pred_check_branch
      %87 = sbr.rel (0) target = $region49
    $region48: #{forward.1} parent=1 // pred_region
      %89 = dma.done [#allocation5], 12288
    $region49: #{forward.1} parent=1 // pred_fallthru
      _
    // Predicated region
    $region50: #{forward.1} parent=1 // pred_check
      _
    $region51: #{forward.1} parent=1 // pred_check_branch
      %91 = sbr.rel (0) target = $region53
    $region52: #{forward.1} parent=1 // pred_region
      %93 = dma.done [#allocation8], 8192
    $region53: #{forward.1} parent=1 // pred_fallthru
      _
    // Predicated region
    $region54: #{forward.1} parent=1 // pred_check
      _
    $region55: #{forward.1} parent=1 // pred_check_branch
      %95 = sbr.rel (0) target = $region57
    $region56: #{forward.1} parent=1 // pred_region
      %97 = dma.done [#allocation8], 8192
    $region57: #{forward.1} parent=1 // pred_fallthru
      _
    // Predicated region
    $region58: #{forward.1} parent=1 // pred_check
      _
    $region59: #{forward.1} parent=1 // pred_check_branch
      %99 = sbr.rel (0) target = $region61
    $region60: #{forward.1} parent=1 // pred_region
      %101 = dma.done [#allocation11], 3072
    $region61: #{forward.1} parent=1 // pred_fallthru
      _
    %v102 = vld [vmem:[%s0] ss:$2 sm:$0xff]
    %s103 = scalar_lea.vmem %s0, 16
    %v104 = vld [vmem:[%s103] ss:$2 sm:$0x3f]
    %s105 = scalar_lea.vmem %s0, 1
    %v106 = vld [vmem:[%s105] ss:$2 sm:$0xff]
    %s107 = scalar_lea.vmem %s0, 17
    %v108 = vld [vmem:[%s107] ss:$2 sm:$0x3f]
    %s109 = scalar_lea.vmem %s0, 2
    %v110 = vld [vmem:[%s109] ss:$2 sm:$0xff]
    %s111 = scalar_lea.vmem %s0, 18
    %v112 = vld [vmem:[%s111] ss:$2 sm:$0x3f]
    %s113 = scalar_lea.vmem %s0, 3
    %v114 = vld [vmem:[%s113] ss:$2 sm:$0xff]
    %s115 = scalar_lea.vmem %s0, 19
    %v116 = vld [vmem:[%s115] ss:$2 sm:$0x3f]
    %s117 = scalar_lea.vmem %s0, 4
    %v118 = vld [vmem:[%s117] ss:$2 sm:$0xff]
    %s119 = scalar_lea.vmem %s0, 20
    %v120 = vld [vmem:[%s119] ss:$2 sm:$0x3f]
    %s121 = scalar_lea.vmem %s0, 5
    %v122 = vld [vmem:[%s121] ss:$2 sm:$0xff]
    %s123 = scalar_lea.vmem %s0, 21
    %v124 = vld [vmem:[%s123] ss:$2 sm:$0x3f]
    %v125 = vpack.c.bf16 %v104, %v102
    %v126 = vpack.c.bf16 %v108, %v106
    %v127 = vpack.c.bf16 %v112, %v110
    %v128 = vpack.c.bf16 %v116, %v114
    %v129 = vpack.c.bf16 %v120, %v118
    %v130 = vpack.c.bf16 %v124, %v122
    %v131 = vld [vmem:[#allocation4] sm:$0xff]
    %v132 = vld [vmem:[#allocation4 + $0x8] sm:$0xff]
    %v133 = vld [vmem:[#allocation4 + $0x10] sm:$0xff]
    %v134 = vld [vmem:[#allocation4 + $0x18] sm:$0xff]
    %v135 = vld [vmem:[#allocation4 + $0x20] sm:$0xff]
    %v136 = vld [vmem:[#allocation4 + $0x28] sm:$0xff]
    %v137 = vld [vmem:[#allocation4 + $0x30] sm:$0xff]
    %v138 = vld [vmem:[#allocation4 + $0x38] sm:$0xff]
    %v139 = vld [vmem:[#allocation4 + $0x40] sm:$0xff]
    %v140 = vld [vmem:[#allocation4 + $0x48] sm:$0xff]
    %v141 = vld [vmem:[#allocation4 + $0x50] sm:$0xff]
    %v142 = vld [vmem:[#allocation4 + $0x58] sm:$0xff]
    %v143 = vld [vmem:[#allocation4 + $0x60] sm:$0xff]
    %v144 = vld [vmem:[#allocation4 + $0x68] sm:$0xff]
    %v145 = vld [vmem:[#allocation4 + $0x70] sm:$0xff]
    %v146 = vld [vmem:[#allocation4 + $0x78] sm:$0xff]
    %v147 = vld [vmem:[#allocation4 + $0x80] sm:$0xff]
    %v148 = vld [vmem:[#allocation4 + $0x88] sm:$0xff]
    %v149 = vld [vmem:[#allocation4 + $0x90] sm:$0xff]
    %v150 = vld [vmem:[#allocation4 + $0x98] sm:$0xff]
    %v151 = vld [vmem:[#allocation4 + $0xa0] sm:$0xff]
    %v152 = vld [vmem:[#allocation4 + $0xa8] sm:$0xff]
    %v153 = vld [vmem:[#allocation4 + $0xb0] sm:$0xff]
    %v154 = vld [vmem:[#allocation4 + $0xb8] sm:$0xff]
    %v155 = vld [vmem:[#allocation4 + $0xc0] sm:$0xff]
    %v156 = vld [vmem:[#allocation4 + $0xc8] sm:$0xff]
    %v157 = vld [vmem:[#allocation4 + $0xd0] sm:$0xff]
    %v158 = vld [vmem:[#allocation4 + $0xd8] sm:$0xff]
    %v159 = vld [vmem:[#allocation4 + $0xe0] sm:$0xff]
    %v160 = vld [vmem:[#allocation4 + $0xe8] sm:$0xff]
    %v161 = vld [vmem:[#allocation4 + $0xf0] sm:$0xff]
    %v162 = vld [vmem:[#allocation4 + $0xf8] sm:$0xff]
    %v163 = vld [vmem:[#allocation4 + $0x100] sm:$0xff]
    %v164 = vld [vmem:[#allocation4 + $0x108] sm:$0xff]
    %v165 = vld [vmem:[#allocation4 + $0x110] sm:$0xff]
    %v166 = vld [vmem:[#allocation4 + $0x118] sm:$0xff]
    %v167 = vld [vmem:[#allocation4 + $0x120] sm:$0xff]
    %v168 = vld [vmem:[#allocation4 + $0x128] sm:$0xff]
    %v169 = vld [vmem:[#allocation4 + $0x130] sm:$0xff]
    %v170 = vld [vmem:[#allocation4 + $0x138] sm:$0xff]
    %v171 = vld [vmem:[#allocation4 + $0x140] sm:$0xff]
    %v172 = vld [vmem:[#allocation4 + $0x148] sm:$0xff]
    %v173 = vld [vmem:[#allocation4 + $0x150] sm:$0xff]
    %v174 = vld [vmem:[#allocation4 + $0x158] sm:$0xff]
    %v175 = vld [vmem:[#allocation4 + $0x160] sm:$0xff]
    %v176 = vld [vmem:[#allocation4 + $0x168] sm:$0xff]
    %v177 = vld [vmem:[#allocation4 + $0x170] sm:$0xff]
    %v178 = vld [vmem:[#allocation4 + $0x178] sm:$0xff]
    %v179 = vld [vmem:[#allocation4 + $0x180] sm:$0xff]
    %v180 = vld [vmem:[#allocation4 + $0x188] sm:$0xff]
    %v181 = vld [vmem:[#allocation4 + $0x190] sm:$0xff]
    %v182 = vld [vmem:[#allocation4 + $0x198] sm:$0xff]
    %v183 = vld [vmem:[#allocation4 + $0x1a0] sm:$0xff]
    %v184 = vld [vmem:[#allocation4 + $0x1a8] sm:$0xff]
    %v185 = vld [vmem:[#allocation4 + $0x1b0] sm:$0xff]
    %v186 = vld [vmem:[#allocation4 + $0x1b8] sm:$0xff]
    %v187 = vld [vmem:[#allocation4 + $0x1c0] sm:$0xff]
    %v188 = vld [vmem:[#allocation4 + $0x1c8] sm:$0xff]
    %v189 = vld [vmem:[#allocation4 + $0x1d0] sm:$0xff]
    %v190 = vld [vmem:[#allocation4 + $0x1d8] sm:$0xff]
    %v191 = vld [vmem:[#allocation4 + $0x1e0] sm:$0xff]
    %v192 = vld [vmem:[#allocation4 + $0x1e8] sm:$0xff]
    %v193 = vld [vmem:[#allocation4 + $0x1f0] sm:$0xff]
    %v194 = vld [vmem:[#allocation4 + $0x1f8] sm:$0xff]
    %v195 = vld [vmem:[#allocation4 + $0x200] sm:$0xff]
    %v196 = vld [vmem:[#allocation4 + $0x208] sm:$0xff]
    %v197 = vld [vmem:[#allocation4 + $0x210] sm:$0xff]
    %v198 = vld [vmem:[#allocation4 + $0x218] sm:$0xff]
    %v199 = vld [vmem:[#allocation4 + $0x220] sm:$0xff]
    %v200 = vld [vmem:[#allocation4 + $0x228] sm:$0xff]
    %v201 = vld [vmem:[#allocation4 + $0x230] sm:$0xff]
    %v202 = vld [vmem:[#allocation4 + $0x238] sm:$0xff]
    %v203 = vld [vmem:[#allocation4 + $0x240] sm:$0xff]
    %v204 = vld [vmem:[#allocation4 + $0x248] sm:$0xff]
    %v205 = vld [vmem:[#allocation4 + $0x250] sm:$0xff]
    %v206 = vld [vmem:[#allocation4 + $0x258] sm:$0xff]
    %v207 = vld [vmem:[#allocation4 + $0x260] sm:$0xff]
    %v208 = vld [vmem:[#allocation4 + $0x268] sm:$0xff]
    %v209 = vld [vmem:[#allocation4 + $0x270] sm:$0xff]
    %v210 = vld [vmem:[#allocation4 + $0x278] sm:$0xff]
    %v211 = vld [vmem:[#allocation4 + $0x280] sm:$0xff]
    %v212 = vld [vmem:[#allocation4 + $0x288] sm:$0xff]
    %v213 = vld [vmem:[#allocation4 + $0x290] sm:$0xff]
    %v214 = vld [vmem:[#allocation4 + $0x298] sm:$0xff]
    %v215 = vld [vmem:[#allocation4 + $0x2a0] sm:$0xff]
    %v216 = vld [vmem:[#allocation4 + $0x2a8] sm:$0xff]
    %v217 = vld [vmem:[#allocation4 + $0x2b0] sm:$0xff]
    %v218 = vld [vmem:[#allocation4 + $0x2b8] sm:$0xff]
    %v219 = vld [vmem:[#allocation4 + $0x2c0] sm:$0xff]
    %v220 = vld [vmem:[#allocation4 + $0x2c8] sm:$0xff]
    %v221 = vld [vmem:[#allocation4 + $0x2d0] sm:$0xff]
    %v222 = vld [vmem:[#allocation4 + $0x2d8] sm:$0xff]
    %v223 = vld [vmem:[#allocation4 + $0x2e0] sm:$0xff]
    %v224 = vld [vmem:[#allocation4 + $0x2e8] sm:$0xff]
    %v225 = vld [vmem:[#allocation4 + $0x2f0] sm:$0xff]
    %v226 = vld [vmem:[#allocation4 + $0x2f8] sm:$0xff]
    %v323 = vunpack.c.l.b16 %v131
    %v324 = vunpack.c.h.b16 %v131
    %v325 = vunpack.c.l.b16 %v132
    %v326 = vunpack.c.h.b16 %v132
    %v327 = vunpack.c.l.b16 %v133
    %v328 = vunpack.c.h.b16 %v133
    %v329 = vunpack.c.l.b16 %v134
    %v330 = vunpack.c.h.b16 %v134
    %v331 = vunpack.c.l.b16 %v135
    %v332 = vunpack.c.h.b16 %v135
    %v333 = vunpack.c.l.b16 %v136
    %v334 = vunpack.c.h.b16 %v136
    %v335 = vunpack.c.l.b16 %v137
    %v336 = vunpack.c.h.b16 %v137
    %v337 = vunpack.c.l.b16 %v138
    %v338 = vunpack.c.h.b16 %v138
    %v339 = vunpack.c.l.b16 %v139
    %v340 = vunpack.c.h.b16 %v139
    %v341 = vunpack.c.l.b16 %v140
    %v342 = vunpack.c.h.b16 %v140
    %v343 = vunpack.c.l.b16 %v141
    %v344 = vunpack.c.h.b16 %v141
    %v345 = vunpack.c.l.b16 %v142
    %v346 = vunpack.c.h.b16 %v142
    %v347 = vunpack.c.l.b16 %v143
    %v348 = vunpack.c.h.b16 %v143
    %v349 = vunpack.c.l.b16 %v144
    %v350 = vunpack.c.h.b16 %v144
    %v351 = vunpack.c.l.b16 %v145
    %v352 = vunpack.c.h.b16 %v145
    %v353 = vunpack.c.l.b16 %v146
    %v354 = vunpack.c.h.b16 %v146
    %v355 = vunpack.c.l.b16 %v147
    %v356 = vunpack.c.h.b16 %v147
    %v357 = vunpack.c.l.b16 %v148
    %v358 = vunpack.c.h.b16 %v148
    %v359 = vunpack.c.l.b16 %v149
    %v360 = vunpack.c.h.b16 %v149
    %v361 = vunpack.c.l.b16 %v150
    %v362 = vunpack.c.h.b16 %v150
    %v363 = vunpack.c.l.b16 %v151
    %v364 = vunpack.c.h.b16 %v151
    %v365 = vunpack.c.l.b16 %v152
    %v366 = vunpack.c.h.b16 %v152
    %v367 = vunpack.c.l.b16 %v153
    %v368 = vunpack.c.h.b16 %v153
    %v369 = vunpack.c.l.b16 %v154
    %v370 = vunpack.c.h.b16 %v154
    %v371 = vunpack.c.l.b16 %v155
    %v372 = vunpack.c.h.b16 %v155
    %v373 = vunpack.c.l.b16 %v156
    %v374 = vunpack.c.h.b16 %v156
    %v375 = vunpack.c.l.b16 %v157
    %v376 = vunpack.c.h.b16 %v157
    %v377 = vunpack.c.l.b16 %v158
    %v378 = vunpack.c.h.b16 %v158
    %v379 = vunpack.c.l.b16 %v159
    %v380 = vunpack.c.h.b16 %v159
    %v381 = vunpack.c.l.b16 %v160
    %v382 = vunpack.c.h.b16 %v160
    %v383 = vunpack.c.l.b16 %v161
    %v384 = vunpack.c.h.b16 %v161
    %v385 = vunpack.c.l.b16 %v162
    %v386 = vunpack.c.h.b16 %v162
    %v387 = vunpack.c.l.b16 %v163
    %v388 = vunpack.c.h.b16 %v163
    %v389 = vunpack.c.l.b16 %v164
    %v390 = vunpack.c.h.b16 %v164
    %v391 = vunpack.c.l.b16 %v165
    %v392 = vunpack.c.h.b16 %v165
    %v393 = vunpack.c.l.b16 %v166
    %v394 = vunpack.c.h.b16 %v166
    %v395 = vunpack.c.l.b16 %v167
    %v396 = vunpack.c.h.b16 %v167
    %v397 = vunpack.c.l.b16 %v168
    %v398 = vunpack.c.h.b16 %v168
    %v399 = vunpack.c.l.b16 %v169
    %v400 = vunpack.c.h.b16 %v169
    %v401 = vunpack.c.l.b16 %v170
    %v402 = vunpack.c.h.b16 %v170
    %v403 = vunpack.c.l.b16 %v171
    %v404 = vunpack.c.h.b16 %v171
    %v405 = vunpack.c.l.b16 %v172
    %v406 = vunpack.c.h.b16 %v172
    %v407 = vunpack.c.l.b16 %v173
    %v408 = vunpack.c.h.b16 %v173
    %v409 = vunpack.c.l.b16 %v174
    %v410 = vunpack.c.h.b16 %v174
    %v411 = vunpack.c.l.b16 %v175
    %v412 = vunpack.c.h.b16 %v175
    %v413 = vunpack.c.l.b16 %v176
    %v414 = vunpack.c.h.b16 %v176
    %v415 = vunpack.c.l.b16 %v177
    %v416 = vunpack.c.h.b16 %v177
    %v417 = vunpack.c.l.b16 %v178
    %v418 = vunpack.c.h.b16 %v178
    %v419 = vunpack.c.l.b16 %v179
    %v420 = vunpack.c.h.b16 %v179
    %v421 = vunpack.c.l.b16 %v180
    %v422 = vunpack.c.h.b16 %v180
    %v423 = vunpack.c.l.b16 %v181
    %v424 = vunpack.c.h.b16 %v181
    %v425 = vunpack.c.l.b16 %v182
    %v426 = vunpack.c.h.b16 %v182
    %v427 = vunpack.c.l.b16 %v183
    %v428 = vunpack.c.h.b16 %v183
    %v429 = vunpack.c.l.b16 %v184
    %v430 = vunpack.c.h.b16 %v184
    %v431 = vunpack.c.l.b16 %v185
    %v432 = vunpack.c.h.b16 %v185
    %v433 = vunpack.c.l.b16 %v186
    %v434 = vunpack.c.h.b16 %v186
    %v435 = vunpack.c.l.b16 %v187
    %v436 = vunpack.c.h.b16 %v187
    %v437 = vunpack.c.l.b16 %v188
    %v438 = vunpack.c.h.b16 %v188
    %v439 = vunpack.c.l.b16 %v189
    %v440 = vunpack.c.h.b16 %v189
    %v441 = vunpack.c.l.b16 %v190
    %v442 = vunpack.c.h.b16 %v190
    %v443 = vunpack.c.l.b16 %v191
    %v444 = vunpack.c.h.b16 %v191
    %v445 = vunpack.c.l.b16 %v192
    %v446 = vunpack.c.h.b16 %v192
    %v447 = vunpack.c.l.b16 %v193
    %v448 = vunpack.c.h.b16 %v193
    %v449 = vunpack.c.l.b16 %v194
    %v450 = vunpack.c.h.b16 %v194
    %v451 = vunpack.c.l.b16 %v195
    %v452 = vunpack.c.h.b16 %v195
    %v453 = vunpack.c.l.b16 %v196
    %v454 = vunpack.c.h.b16 %v196
    %v455 = vunpack.c.l.b16 %v197
    %v456 = vunpack.c.h.b16 %v197
    %v457 = vunpack.c.l.b16 %v198
    %v458 = vunpack.c.h.b16 %v198
    %v459 = vunpack.c.l.b16 %v199
    %v460 = vunpack.c.h.b16 %v199
    %v461 = vunpack.c.l.b16 %v200
    %v462 = vunpack.c.h.b16 %v200
    %v463 = vunpack.c.l.b16 %v201
    %v464 = vunpack.c.h.b16 %v201
    %v465 = vunpack.c.l.b16 %v202
    %v466 = vunpack.c.h.b16 %v202
    %v467 = vunpack.c.l.b16 %v203
    %v468 = vunpack.c.h.b16 %v203
    %v469 = vunpack.c.l.b16 %v204
    %v470 = vunpack.c.h.b16 %v204
    %v471 = vunpack.c.l.b16 %v205
    %v472 = vunpack.c.h.b16 %v205
    %v473 = vunpack.c.l.b16 %v206
    %v474 = vunpack.c.h.b16 %v206
    %v475 = vunpack.c.l.b16 %v207
    %v476 = vunpack.c.h.b16 %v207
    %v477 = vunpack.c.l.b16 %v208
    %v478 = vunpack.c.h.b16 %v208
    %v479 = vunpack.c.l.b16 %v209
    %v480 = vunpack.c.h.b16 %v209
    %v481 = vunpack.c.l.b16 %v210
    %v482 = vunpack.c.h.b16 %v210
    %v483 = vunpack.c.l.b16 %v211
    %v484 = vunpack.c.h.b16 %v211
    %v485 = vunpack.c.l.b16 %v212
    %v486 = vunpack.c.h.b16 %v212
    %v487 = vunpack.c.l.b16 %v213
    %v488 = vunpack.c.h.b16 %v213
    %v489 = vunpack.c.l.b16 %v214
    %v490 = vunpack.c.h.b16 %v214
    %v491 = vunpack.c.l.b16 %v215
    %v492 = vunpack.c.h.b16 %v215
    %v493 = vunpack.c.l.b16 %v216
    %v494 = vunpack.c.h.b16 %v216
    %v495 = vunpack.c.l.b16 %v217
    %v496 = vunpack.c.h.b16 %v217
    %v497 = vunpack.c.l.b16 %v218
    %v498 = vunpack.c.h.b16 %v218
    %v499 = vunpack.c.l.b16 %v219
    %v500 = vunpack.c.h.b16 %v219
    %v501 = vunpack.c.l.b16 %v220
    %v502 = vunpack.c.h.b16 %v220
    %v503 = vunpack.c.l.b16 %v221
    %v504 = vunpack.c.h.b16 %v221
    %v505 = vunpack.c.l.b16 %v222
    %v506 = vunpack.c.h.b16 %v222
    %v507 = vunpack.c.l.b16 %v223
    %v508 = vunpack.c.h.b16 %v223
    %v509 = vunpack.c.l.b16 %v224
    %v510 = vunpack.c.h.b16 %v224
    %v511 = vunpack.c.l.b16 %v225
    %v512 = vunpack.c.h.b16 %v225
    %v513 = vunpack.c.l.b16 %v226
    %v514 = vunpack.c.h.b16 %v226
    %v515 = vpack.c.b16 %v325, %v323
    %v516 = vpack.c.b16 %v326, %v324
    %v517 = vpack.c.b16 %v329, %v327
    %v518 = vpack.c.b16 %v330, %v328
    %v519 = vpack.c.b16 %v333, %v331
    %v520 = vpack.c.b16 %v334, %v332
    %v521 = vpack.c.b16 %v337, %v335
    %v522 = vpack.c.b16 %v338, %v336
    %v523 = vpack.c.b16 %v341, %v339
    %v524 = vpack.c.b16 %v342, %v340
    %v525 = vpack.c.b16 %v345, %v343
    %v526 = vpack.c.b16 %v346, %v344
    %v527 = vpack.c.b16 %v349, %v347
    %v528 = vpack.c.b16 %v350, %v348
    %v529 = vpack.c.b16 %v353, %v351
    %v530 = vpack.c.b16 %v354, %v352
    %v531 = vpack.c.b16 %v357, %v355
    %v532 = vpack.c.b16 %v358, %v356
    %v533 = vpack.c.b16 %v361, %v359
    %v534 = vpack.c.b16 %v362, %v360
    %v535 = vpack.c.b16 %v365, %v363
    %v536 = vpack.c.b16 %v366, %v364
    %v537 = vpack.c.b16 %v369, %v367
    %v538 = vpack.c.b16 %v370, %v368
    %v539 = vpack.c.b16 %v373, %v371
    %v540 = vpack.c.b16 %v374, %v372
    %v541 = vpack.c.b16 %v377, %v375
    %v542 = vpack.c.b16 %v378, %v376
    %v543 = vpack.c.b16 %v381, %v379
    %v544 = vpack.c.b16 %v382, %v380
    %v545 = vpack.c.b16 %v385, %v383
    %v546 = vpack.c.b16 %v386, %v384
    %v547 = vpack.c.b16 %v389, %v387
    %v548 = vpack.c.b16 %v390, %v388
    %v549 = vpack.c.b16 %v393, %v391
    %v550 = vpack.c.b16 %v394, %v392
    %v551 = vpack.c.b16 %v397, %v395
    %v552 = vpack.c.b16 %v398, %v396
    %v553 = vpack.c.b16 %v401, %v399
    %v554 = vpack.c.b16 %v402, %v400
    %v555 = vpack.c.b16 %v405, %v403
    %v556 = vpack.c.b16 %v406, %v404
    %v557 = vpack.c.b16 %v409, %v407
    %v558 = vpack.c.b16 %v410, %v408
    %v559 = vpack.c.b16 %v413, %v411
    %v560 = vpack.c.b16 %v414, %v412
    %v561 = vpack.c.b16 %v417, %v415
    %v562 = vpack.c.b16 %v418, %v416
    %v563 = vpack.c.b16 %v421, %v419
    %v564 = vpack.c.b16 %v422, %v420
    %v565 = vpack.c.b16 %v425, %v423
    %v566 = vpack.c.b16 %v426, %v424
    %v567 = vpack.c.b16 %v429, %v427
    %v568 = vpack.c.b16 %v430, %v428
    %v569 = vpack.c.b16 %v433, %v431
    %v570 = vpack.c.b16 %v434, %v432
    %v571 = vpack.c.b16 %v437, %v435
    %v572 = vpack.c.b16 %v438, %v436
    %v573 = vpack.c.b16 %v441, %v439
    %v574 = vpack.c.b16 %v442, %v440
    %v575 = vpack.c.b16 %v445, %v443
    %v576 = vpack.c.b16 %v446, %v444
    %v577 = vpack.c.b16 %v449, %v447
    %v578 = vpack.c.b16 %v450, %v448
    %v579 = vpack.c.b16 %v453, %v451
    %v580 = vpack.c.b16 %v454, %v452
    %v581 = vpack.c.b16 %v457, %v455
    %v582 = vpack.c.b16 %v458, %v456
    %v583 = vpack.c.b16 %v461, %v459
    %v584 = vpack.c.b16 %v462, %v460
    %v585 = vpack.c.b16 %v465, %v463
    %v586 = vpack.c.b16 %v466, %v464
    %v587 = vpack.c.b16 %v469, %v467
    %v588 = vpack.c.b16 %v470, %v468
    %v589 = vpack.c.b16 %v473, %v471
    %v590 = vpack.c.b16 %v474, %v472
    %v591 = vpack.c.b16 %v477, %v475
    %v592 = vpack.c.b16 %v478, %v476
    %v593 = vpack.c.b16 %v481, %v479
    %v594 = vpack.c.b16 %v482, %v480
    %v595 = vpack.c.b16 %v485, %v483
    %v596 = vpack.c.b16 %v486, %v484
    %v597 = vpack.c.b16 %v489, %v487
    %v598 = vpack.c.b16 %v490, %v488
    %v599 = vpack.c.b16 %v493, %v491
    %v600 = vpack.c.b16 %v494, %v492
    %v601 = vpack.c.b16 %v497, %v495
    %v602 = vpack.c.b16 %v498, %v496
    %v603 = vpack.c.b16 %v501, %v499
    %v604 = vpack.c.b16 %v502, %v500
    %v605 = vpack.c.b16 %v505, %v503
    %v606 = vpack.c.b16 %v506, %v504
    %v607 = vpack.c.b16 %v509, %v507
    %v608 = vpack.c.b16 %v510, %v508
    %v609 = vpack.c.b16 %v513, %v511
    %v610 = vpack.c.b16 %v514, %v512
    %707 = vmatpush.bf16.msra.mxu0 %v529
    %708 = vmatpush.bf16.msra.mxu0 %v527
    %709 = vmatpush.bf16.msra.mxu0 %v525
    %710 = vmatpush.bf16.msra.mxu0 %v523
    %711 = vmatpush.bf16.msra.mxu0 %v521
    %712 = vmatpush.bf16.msra.mxu0 %v519
    %713 = vmatpush.bf16.msra.mxu0 %v517
    %714 = vmatpush.bf16.msra.mxu0 %v515
    %715 = vmatmul.bf16.gmra.mxu0 %v125
    %v716 = vpop.f32.mrf.mxu0
    %v717 = vadd.f32 0.0, %v716
    %v718 = vpop.f32.mrf.mxu0
    %v719 = vadd.f32 0.0, %v718
    %720 = vdwg.mxu0
    %721 = vmatpush.bf16.msra.mxu0 %v545
    %722 = vmatpush.bf16.msra.mxu0 %v543
    %723 = vmatpush.bf16.msra.mxu0 %v541
    %724 = vmatpush.bf16.msra.mxu0 %v539
    %725 = vmatpush.bf16.msra.mxu0 %v537
    %726 = vmatpush.bf16.msra.mxu0 %v535
    %727 = vmatpush.bf16.msra.mxu0 %v533
    %728 = vmatpush.bf16.msra.mxu0 %v531
    %729 = vmatmul.bf16.gmra.mxu0 %v126
    %v730 = vpop.f32.mrf.mxu0
    %v731 = vadd.f32 %v717, %v730
    %v732 = vpop.f32.mrf.mxu0
    %v733 = vadd.f32 %v719, %v732
    %734 = vdwg.mxu0
    %735 = vmatpush.bf16.msra.mxu0 %v561
    %736 = vmatpush.bf16.msra.mxu0 %v559
    %737 = vmatpush.bf16.msra.mxu0 %v557
    %738 = vmatpush.bf16.msra.mxu0 %v555
    %739 = vmatpush.bf16.msra.mxu0 %v553
    %740 = vmatpush.bf16.msra.mxu0 %v551
    %741 = vmatpush.bf16.msra.mxu0 %v549
    %742 = vmatpush.bf16.msra.mxu0 %v547
    %743 = vmatmul.bf16.gmra.mxu0 %v127
    %v744 = vpop.f32.mrf.mxu0
    %v745 = vadd.f32 %v731, %v744
    %v746 = vpop.f32.mrf.mxu0
    %v747 = vadd.f32 %v733, %v746
    %748 = vdwg.mxu0
    %749 = vmatpush.bf16.msra.mxu0 %v577
    %750 = vmatpush.bf16.msra.mxu0 %v575
    %751 = vmatpush.bf16.msra.mxu0 %v573
    %752 = vmatpush.bf16.msra.mxu0 %v571
    %753 = vmatpush.bf16.msra.mxu0 %v569
    %754 = vmatpush.bf16.msra.mxu0 %v567
    %755 = vmatpush.bf16.msra.mxu0 %v565
    %756 = vmatpush.bf16.msra.mxu0 %v563
    %757 = vmatmul.bf16.gmra.mxu0 %v128
    %v758 = vpop.f32.mrf.mxu0
    %v759 = vadd.f32 %v745, %v758
    %v760 = vpop.f32.mrf.mxu0
    %v761 = vadd.f32 %v747, %v760
    %762 = vdwg.mxu0
    %763 = vmatpush.bf16.msra.mxu0 %v593
    %764 = vmatpush.bf16.msra.mxu0 %v591
    %765 = vmatpush.bf16.msra.mxu0 %v589
    %766 = vmatpush.bf16.msra.mxu0 %v587
    %767 = vmatpush.bf16.msra.mxu0 %v585
    %768 = vmatpush.bf16.msra.mxu0 %v583
    %769 = vmatpush.bf16.msra.mxu0 %v581
    %770 = vmatpush.bf16.msra.mxu0 %v579
    %771 = vmatmul.bf16.gmra.mxu0 %v129
    %v772 = vpop.f32.mrf.mxu0
    %v773 = vadd.f32 %v759, %v772
    %v774 = vpop.f32.mrf.mxu0
    %v775 = vadd.f32 %v761, %v774
    %776 = vdwg.mxu0
    %777 = vmatpush.bf16.msra.mxu0 %v609
    %778 = vmatpush.bf16.msra.mxu0 %v607
    %779 = vmatpush.bf16.msra.mxu0 %v605
    %780 = vmatpush.bf16.msra.mxu0 %v603
    %781 = vmatpush.bf16.msra.mxu0 %v601
    %782 = vmatpush.bf16.msra.mxu0 %v599
    %783 = vmatpush.bf16.msra.mxu0 %v597
    %784 = vmatpush.bf16.msra.mxu0 %v595
    %785 = vmatmul.bf16.gmra.mxu0 %v130
    %v786 = vpop.f32.mrf.mxu0
    %v787 = vadd.f32 %v773, %v786
    %v788 = vpop.f32.mrf.mxu0
    %v789 = vadd.f32 %v775, %v788
    %790 = vdwg.mxu0
    %791 = vmatpush.bf16.msra.mxu0 %v530
    %792 = vmatpush.bf16.msra.mxu0 %v528
    %793 = vmatpush.bf16.msra.mxu0 %v526
    %794 = vmatpush.bf16.msra.mxu0 %v524
    %795 = vmatpush.bf16.msra.mxu0 %v522
    %796 = vmatpush.bf16.msra.mxu0 %v520
    %797 = vmatpush.bf16.msra.mxu0 %v518
    %798 = vmatpush.bf16.msra.mxu0 %v516
    %799 = vmatmul.bf16.gmra.mxu0 %v125
    %v800 = vpop.f32.mrf.mxu0
    %v801 = vadd.f32 0.0, %v800
    %v802 = vpop.f32.mrf.mxu0
    %v803 = vadd.f32 0.0, %v802
    %804 = vdwg.mxu0
    %805 = vmatpush.bf16.msra.mxu0 %v546
    %806 = vmatpush.bf16.msra.mxu0 %v544
    %807 = vmatpush.bf16.msra.mxu0 %v542
    %808 = vmatpush.bf16.msra.mxu0 %v540
    %809 = vmatpush.bf16.msra.mxu0 %v538
    %810 = vmatpush.bf16.msra.mxu0 %v536
    %811 = vmatpush.bf16.msra.mxu0 %v534
    %812 = vmatpush.bf16.msra.mxu0 %v532
    %813 = vmatmul.bf16.gmra.mxu0 %v126
    %v814 = vpop.f32.mrf.mxu0
    %v815 = vadd.f32 %v801, %v814
    %v816 = vpop.f32.mrf.mxu0
    %v817 = vadd.f32 %v803, %v816
    %818 = vdwg.mxu0
    %819 = vmatpush.bf16.msra.mxu0 %v562
    %820 = vmatpush.bf16.msra.mxu0 %v560
    %821 = vmatpush.bf16.msra.mxu0 %v558
    %822 = vmatpush.bf16.msra.mxu0 %v556
    %823 = vmatpush.bf16.msra.mxu0 %v554
    %824 = vmatpush.bf16.msra.mxu0 %v552
    %825 = vmatpush.bf16.msra.mxu0 %v550
    %826 = vmatpush.bf16.msra.mxu0 %v548
    %827 = vmatmul.bf16.gmra.mxu0 %v127
    %v828 = vpop.f32.mrf.mxu0
    %v829 = vadd.f32 %v815, %v828
    %v830 = vpop.f32.mrf.mxu0
    %v831 = vadd.f32 %v817, %v830
    %832 = vdwg.mxu0
    %833 = vmatpush.bf16.msra.mxu0 %v578
    %834 = vmatpush.bf16.msra.mxu0 %v576
    %835 = vmatpush.bf16.msra.mxu0 %v574
    %836 = vmatpush.bf16.msra.mxu0 %v572
    %837 = vmatpush.bf16.msra.mxu0 %v570
    %838 = vmatpush.bf16.msra.mxu0 %v568
    %839 = vmatpush.bf16.msra.mxu0 %v566
    %840 = vmatpush.bf16.msra.mxu0 %v564
    %841 = vmatmul.bf16.gmra.mxu0 %v128
    %v842 = vpop.f32.mrf.mxu0
    %v843 = vadd.f32 %v829, %v842
    %v844 = vpop.f32.mrf.mxu0
    %v845 = vadd.f32 %v831, %v844
    %846 = vdwg.mxu0
    %847 = vmatpush.bf16.msra.mxu0 %v594
    %848 = vmatpush.bf16.msra.mxu0 %v592
    %849 = vmatpush.bf16.msra.mxu0 %v590
    %850 = vmatpush.bf16.msra.mxu0 %v588
    %851 = vmatpush.bf16.msra.mxu0 %v586
    %852 = vmatpush.bf16.msra.mxu0 %v584
    %853 = vmatpush.bf16.msra.mxu0 %v582
    %854 = vmatpush.bf16.msra.mxu0 %v580
    %855 = vmatmul.bf16.gmra.mxu0 %v129
    %v856 = vpop.f32.mrf.mxu0
    %v857 = vadd.f32 %v843, %v856
    %v858 = vpop.f32.mrf.mxu0
    %v859 = vadd.f32 %v845, %v858
    %860 = vdwg.mxu0
    %861 = vmatpush.bf16.msra.mxu0 %v610
    %862 = vmatpush.bf16.msra.mxu0 %v608
    %863 = vmatpush.bf16.msra.mxu0 %v606
    %864 = vmatpush.bf16.msra.mxu0 %v604
    %865 = vmatpush.bf16.msra.mxu0 %v602
    %866 = vmatpush.bf16.msra.mxu0 %v600
    %867 = vmatpush.bf16.msra.mxu0 %v598
    %868 = vmatpush.bf16.msra.mxu0 %v596
    %869 = vmatmul.bf16.gmra.mxu0 %v130
    %v870 = vpop.f32.mrf.mxu0
    %v871 = vadd.f32 %v857, %v870
    %v872 = vpop.f32.mrf.mxu0
    %v873 = vadd.f32 %v859, %v872
    %874 = vdwg.mxu0
    %v875 = vmax.f32 %v787, %v871
    %v876 = vmax.f32 %v789, %v873
    %877 = vrot.lane.b32.xlu0 %v875, 64
    %v878 = vpop.permute.xlu0 %877
    %879 = vrot.lane.b32.xlu0 %v876, 64
    %v880 = vpop.permute.xlu0 %879
    %v881 = vmax.f32 %v875, %v878
    %v882 = vmax.f32 %v876, %v880
    %v883 = vld [vmem:[%s4] sm:$0x1]
    %v885 = vperm.slane %v883, 0
    %v887 = vadd.f32 %v881, %v885
    %v888 = vadd.f32 %v882, %v885
    %v889 = vmax.f32 %v887, 0.0
    %v890 = vmax.f32 %v888, 0.0
    %891 = vst [vmem:[#allocation2] sm:$0x1] 0.0
    %892 = vst [vmem:[#allocation2 + $0x1] sm:$0xff] %v889
    %893 = vst [vmem:[#allocation2 + $0x9] sm:$0x3f] %v890
    %894 = vst [vmem:[#allocation2 + $0xf] sm:$0x1] 0.0
    %v895 = vld [vmem:[#allocation2] ss:$2 sm:$0x7f]
    %s896 = scalar_lea.vmem [#allocation2], 1
    %v897 = vld [vmem:[%s896] ss:$2 sm:$0x7f]
    %s898 = scalar_lea.vmem [#allocation2], 2
    %v899 = vld [vmem:[%s898] ss:$2 sm:$0x7f]
    %s900 = scalar_lea.vmem [#allocation2], 3
    %v901 = vld [vmem:[%s900] ss:$2 sm:$0x7f]
    %v902 = vpack.c.bf16 %v895, %v895
    %v903 = vpack.c.bf16 %v897, %v897
    %v904 = vpack.c.bf16 %v899, %v899
    %v905 = vpack.c.bf16 %v901, %v901
    %v906 = vld [vmem:[#allocation7] sm:$0xff]
    %v907 = vld [vmem:[#allocation7 + $0x8] sm:$0xff]
    %v908 = vld [vmem:[#allocation7 + $0x10] sm:$0xff]
    %v909 = vld [vmem:[#allocation7 + $0x18] sm:$0xff]
    %v910 = vld [vmem:[#allocation7 + $0x20] sm:$0xff]
    %v911 = vld [vmem:[#allocation7 + $0x28] sm:$0xff]
    %v912 = vld [vmem:[#allocation7 + $0x30] sm:$0xff]
    %v913 = vld [vmem:[#allocation7 + $0x38] sm:$0xff]
    %v914 = vld [vmem:[#allocation7 + $0x40] sm:$0xff]
    %v915 = vld [vmem:[#allocation7 + $0x48] sm:$0xff]
    %v916 = vld [vmem:[#allocation7 + $0x50] sm:$0xff]
    %v917 = vld [vmem:[#allocation7 + $0x58] sm:$0xff]
    %v918 = vld [vmem:[#allocation7 + $0x60] sm:$0xff]
    %v919 = vld [vmem:[#allocation7 + $0x68] sm:$0xff]
    %v920 = vld [vmem:[#allocation7 + $0x70] sm:$0xff]
    %v921 = vld [vmem:[#allocation7 + $0x78] sm:$0xff]
    %v922 = vld [vmem:[#allocation7 + $0x80] sm:$0xff]
    %v923 = vld [vmem:[#allocation7 + $0x88] sm:$0xff]
    %v924 = vld [vmem:[#allocation7 + $0x90] sm:$0xff]
    %v925 = vld [vmem:[#allocation7 + $0x98] sm:$0xff]
    %v926 = vld [vmem:[#allocation7 + $0xa0] sm:$0xff]
    %v927 = vld [vmem:[#allocation7 + $0xa8] sm:$0xff]
    %v928 = vld [vmem:[#allocation7 + $0xb0] sm:$0xff]
    %v929 = vld [vmem:[#allocation7 + $0xb8] sm:$0xff]
    %v930 = vld [vmem:[#allocation7 + $0xc0] sm:$0xff]
    %v931 = vld [vmem:[#allocation7 + $0xc8] sm:$0xff]
    %v932 = vld [vmem:[#allocation7 + $0xd0] sm:$0xff]
    %v933 = vld [vmem:[#allocation7 + $0xd8] sm:$0xff]
    %v934 = vld [vmem:[#allocation7 + $0xe0] sm:$0xff]
    %v935 = vld [vmem:[#allocation7 + $0xe8] sm:$0xff]
    %v936 = vld [vmem:[#allocation7 + $0xf0] sm:$0xff]
    %v937 = vld [vmem:[#allocation7 + $0xf8] sm:$0xff]
    %v938 = vld [vmem:[#allocation7 + $0x100] sm:$0xff]
    %v939 = vld [vmem:[#allocation7 + $0x108] sm:$0xff]
    %v940 = vld [vmem:[#allocation7 + $0x110] sm:$0xff]
    %v941 = vld [vmem:[#allocation7 + $0x118] sm:$0xff]
    %v942 = vld [vmem:[#allocation7 + $0x120] sm:$0xff]
    %v943 = vld [vmem:[#allocation7 + $0x128] sm:$0xff]
    %v944 = vld [vmem:[#allocation7 + $0x130] sm:$0xff]
    %v945 = vld [vmem:[#allocation7 + $0x138] sm:$0xff]
    %v946 = vld [vmem:[#allocation7 + $0x140] sm:$0xff]
    %v947 = vld [vmem:[#allocation7 + $0x148] sm:$0xff]
    %v948 = vld [vmem:[#allocation7 + $0x150] sm:$0xff]
    %v949 = vld [vmem:[#allocation7 + $0x158] sm:$0xff]
    %v950 = vld [vmem:[#allocation7 + $0x160] sm:$0xff]
    %v951 = vld [vmem:[#allocation7 + $0x168] sm:$0xff]
    %v952 = vld [vmem:[#allocation7 + $0x170] sm:$0xff]
    %v953 = vld [vmem:[#allocation7 + $0x178] sm:$0xff]
    %v954 = vld [vmem:[#allocation7 + $0x180] sm:$0xff]
    %v955 = vld [vmem:[#allocation7 + $0x188] sm:$0xff]
    %v956 = vld [vmem:[#allocation7 + $0x190] sm:$0xff]
    %v957 = vld [vmem:[#allocation7 + $0x198] sm:$0xff]
    %v958 = vld [vmem:[#allocation7 + $0x1a0] sm:$0xff]
    %v959 = vld [vmem:[#allocation7 + $0x1a8] sm:$0xff]
    %v960 = vld [vmem:[#allocation7 + $0x1b0] sm:$0xff]
    %v961 = vld [vmem:[#allocation7 + $0x1b8] sm:$0xff]
    %v962 = vld [vmem:[#allocation7 + $0x1c0] sm:$0xff]
    %v963 = vld [vmem:[#allocation7 + $0x1c8] sm:$0xff]
    %v964 = vld [vmem:[#allocation7 + $0x1d0] sm:$0xff]
    %v965 = vld [vmem:[#allocation7 + $0x1d8] sm:$0xff]
    %v966 = vld [vmem:[#allocation7 + $0x1e0] sm:$0xff]
    %v967 = vld [vmem:[#allocation7 + $0x1e8] sm:$0xff]
    %v968 = vld [vmem:[#allocation7 + $0x1f0] sm:$0xff]
    %v969 = vld [vmem:[#allocation7 + $0x1f8] sm:$0xff]
    %v1034 = vunpack.c.l.b16 %v906
    %v1035 = vunpack.c.h.b16 %v906
    %v1036 = vunpack.c.l.b16 %v907
    %v1037 = vunpack.c.h.b16 %v907
    %v1038 = vunpack.c.l.b16 %v908
    %v1039 = vunpack.c.h.b16 %v908
    %v1040 = vunpack.c.l.b16 %v909
    %v1041 = vunpack.c.h.b16 %v909
    %v1042 = vunpack.c.l.b16 %v910
    %v1043 = vunpack.c.h.b16 %v910
    %v1044 = vunpack.c.l.b16 %v911
    %v1045 = vunpack.c.h.b16 %v911
    %v1046 = vunpack.c.l.b16 %v912
    %v1047 = vunpack.c.h.b16 %v912
    %v1048 = vunpack.c.l.b16 %v913
    %v1049 = vunpack.c.h.b16 %v913
    %v1050 = vunpack.c.l.b16 %v914
    %v1051 = vunpack.c.h.b16 %v914
    %v1052 = vunpack.c.l.b16 %v915
    %v1053 = vunpack.c.h.b16 %v915
    %v1054 = vunpack.c.l.b16 %v916
    %v1055 = vunpack.c.h.b16 %v916
    %v1056 = vunpack.c.l.b16 %v917
    %v1057 = vunpack.c.h.b16 %v917
    %v1058 = vunpack.c.l.b16 %v918
    %v1059 = vunpack.c.h.b16 %v918
    %v1060 = vunpack.c.l.b16 %v919
    %v1061 = vunpack.c.h.b16 %v919
    %v1062 = vunpack.c.l.b16 %v920
    %v1063 = vunpack.c.h.b16 %v920
    %v1064 = vunpack.c.l.b16 %v921
    %v1065 = vunpack.c.h.b16 %v921
    %v1066 = vunpack.c.l.b16 %v922
    %v1067 = vunpack.c.h.b16 %v922
    %v1068 = vunpack.c.l.b16 %v923
    %v1069 = vunpack.c.h.b16 %v923
    %v1070 = vunpack.c.l.b16 %v924
    %v1071 = vunpack.c.h.b16 %v924
    %v1072 = vunpack.c.l.b16 %v925
    %v1073 = vunpack.c.h.b16 %v925
    %v1074 = vunpack.c.l.b16 %v926
    %v1075 = vunpack.c.h.b16 %v926
    %v1076 = vunpack.c.l.b16 %v927
    %v1077 = vunpack.c.h.b16 %v927
    %v1078 = vunpack.c.l.b16 %v928
    %v1079 = vunpack.c.h.b16 %v928
    %v1080 = vunpack.c.l.b16 %v929
    %v1081 = vunpack.c.h.b16 %v929
    %v1082 = vunpack.c.l.b16 %v930
    %v1083 = vunpack.c.h.b16 %v930
    %v1084 = vunpack.c.l.b16 %v931
    %v1085 = vunpack.c.h.b16 %v931
    %v1086 = vunpack.c.l.b16 %v932
    %v1087 = vunpack.c.h.b16 %v932
    %v1088 = vunpack.c.l.b16 %v933
    %v1089 = vunpack.c.h.b16 %v933
    %v1090 = vunpack.c.l.b16 %v934
    %v1091 = vunpack.c.h.b16 %v934
    %v1092 = vunpack.c.l.b16 %v935
    %v1093 = vunpack.c.h.b16 %v935
    %v1094 = vunpack.c.l.b16 %v936
    %v1095 = vunpack.c.h.b16 %v936
    %v1096 = vunpack.c.l.b16 %v937
    %v1097 = vunpack.c.h.b16 %v937
    %v1098 = vunpack.c.l.b16 %v938
    %v1099 = vunpack.c.h.b16 %v938
    %v1100 = vunpack.c.l.b16 %v939
    %v1101 = vunpack.c.h.b16 %v939
    %v1102 = vunpack.c.l.b16 %v940
    %v1103 = vunpack.c.h.b16 %v940
    %v1104 = vunpack.c.l.b16 %v941
    %v1105 = vunpack.c.h.b16 %v941
    %v1106 = vunpack.c.l.b16 %v942
    %v1107 = vunpack.c.h.b16 %v942
    %v1108 = vunpack.c.l.b16 %v943
    %v1109 = vunpack.c.h.b16 %v943
    %v1110 = vunpack.c.l.b16 %v944
    %v1111 = vunpack.c.h.b16 %v944
    %v1112 = vunpack.c.l.b16 %v945
    %v1113 = vunpack.c.h.b16 %v945
    %v1114 = vunpack.c.l.b16 %v946
    %v1115 = vunpack.c.h.b16 %v946
    %v1116 = vunpack.c.l.b16 %v947
    %v1117 = vunpack.c.h.b16 %v947
    %v1118 = vunpack.c.l.b16 %v948
    %v1119 = vunpack.c.h.b16 %v948
    %v1120 = vunpack.c.l.b16 %v949
    %v1121 = vunpack.c.h.b16 %v949
    %v1122 = vunpack.c.l.b16 %v950
    %v1123 = vunpack.c.h.b16 %v950
    %v1124 = vunpack.c.l.b16 %v951
    %v1125 = vunpack.c.h.b16 %v951
    %v1126 = vunpack.c.l.b16 %v952
    %v1127 = vunpack.c.h.b16 %v952
    %v1128 = vunpack.c.l.b16 %v953
    %v1129 = vunpack.c.h.b16 %v953
    %v1130 = vunpack.c.l.b16 %v954
    %v1131 = vunpack.c.h.b16 %v954
    %v1132 = vunpack.c.l.b16 %v955
    %v1133 = vunpack.c.h.b16 %v955
    %v1134 = vunpack.c.l.b16 %v956
    %v1135 = vunpack.c.h.b16 %v956
    %v1136 = vunpack.c.l.b16 %v957
    %v1137 = vunpack.c.h.b16 %v957
    %v1138 = vunpack.c.l.b16 %v958
    %v1139 = vunpack.c.h.b16 %v958
    %v1140 = vunpack.c.l.b16 %v959
    %v1141 = vunpack.c.h.b16 %v959
    %v1142 = vunpack.c.l.b16 %v960
    %v1143 = vunpack.c.h.b16 %v960
    %v1144 = vunpack.c.l.b16 %v961
    %v1145 = vunpack.c.h.b16 %v961
    %v1146 = vunpack.c.l.b16 %v962
    %v1147 = vunpack.c.h.b16 %v962
    %v1148 = vunpack.c.l.b16 %v963
    %v1149 = vunpack.c.h.b16 %v963
    %v1150 = vunpack.c.l.b16 %v964
    %v1151 = vunpack.c.h.b16 %v964
    %v1152 = vunpack.c.l.b16 %v965
    %v1153 = vunpack.c.h.b16 %v965
    %v1154 = vunpack.c.l.b16 %v966
    %v1155 = vunpack.c.h.b16 %v966
    %v1156 = vunpack.c.l.b16 %v967
    %v1157 = vunpack.c.h.b16 %v967
    %v1158 = vunpack.c.l.b16 %v968
    %v1159 = vunpack.c.h.b16 %v968
    %v1160 = vunpack.c.l.b16 %v969
    %v1161 = vunpack.c.h.b16 %v969
    %v1162 = vpack.c.b16 %v1036, %v1034
    %v1163 = vpack.c.b16 %v1037, %v1035
    %v1164 = vpack.c.b16 %v1040, %v1038
    %v1165 = vpack.c.b16 %v1041, %v1039
    %v1166 = vpack.c.b16 %v1044, %v1042
    %v1167 = vpack.c.b16 %v1045, %v1043
    %v1168 = vpack.c.b16 %v1048, %v1046
    %v1169 = vpack.c.b16 %v1049, %v1047
    %v1170 = vpack.c.b16 %v1052, %v1050
    %v1171 = vpack.c.b16 %v1053, %v1051
    %v1172 = vpack.c.b16 %v1056, %v1054
    %v1173 = vpack.c.b16 %v1057, %v1055
    %v1174 = vpack.c.b16 %v1060, %v1058
    %v1175 = vpack.c.b16 %v1061, %v1059
    %v1176 = vpack.c.b16 %v1064, %v1062
    %v1177 = vpack.c.b16 %v1065, %v1063
    %v1178 = vpack.c.b16 %v1068, %v1066
    %v1179 = vpack.c.b16 %v1069, %v1067
    %v1180 = vpack.c.b16 %v1072, %v1070
    %v1181 = vpack.c.b16 %v1073, %v1071
    %v1182 = vpack.c.b16 %v1076, %v1074
    %v1183 = vpack.c.b16 %v1077, %v1075
    %v1184 = vpack.c.b16 %v1080, %v1078
    %v1185 = vpack.c.b16 %v1081, %v1079
    %v1186 = vpack.c.b16 %v1084, %v1082
    %v1187 = vpack.c.b16 %v1085, %v1083
    %v1188 = vpack.c.b16 %v1088, %v1086
    %v1189 = vpack.c.b16 %v1089, %v1087
    %v1190 = vpack.c.b16 %v1092, %v1090
    %v1191 = vpack.c.b16 %v1093, %v1091
    %v1192 = vpack.c.b16 %v1096, %v1094
    %v1193 = vpack.c.b16 %v1097, %v1095
    %v1194 = vpack.c.b16 %v1100, %v1098
    %v1195 = vpack.c.b16 %v1101, %v1099
    %v1196 = vpack.c.b16 %v1104, %v1102
    %v1197 = vpack.c.b16 %v1105, %v1103
    %v1198 = vpack.c.b16 %v1108, %v1106
    %v1199 = vpack.c.b16 %v1109, %v1107
    %v1200 = vpack.c.b16 %v1112, %v1110
    %v1201 = vpack.c.b16 %v1113, %v1111
    %v1202 = vpack.c.b16 %v1116, %v1114
    %v1203 = vpack.c.b16 %v1117, %v1115
    %v1204 = vpack.c.b16 %v1120, %v1118
    %v1205 = vpack.c.b16 %v1121, %v1119
    %v1206 = vpack.c.b16 %v1124, %v1122
    %v1207 = vpack.c.b16 %v1125, %v1123
    %v1208 = vpack.c.b16 %v1128, %v1126
    %v1209 = vpack.c.b16 %v1129, %v1127
    %v1210 = vpack.c.b16 %v1132, %v1130
    %v1211 = vpack.c.b16 %v1133, %v1131
    %v1212 = vpack.c.b16 %v1136, %v1134
    %v1213 = vpack.c.b16 %v1137, %v1135
    %v1214 = vpack.c.b16 %v1140, %v1138
    %v1215 = vpack.c.b16 %v1141, %v1139
    %v1216 = vpack.c.b16 %v1144, %v1142
    %v1217 = vpack.c.b16 %v1145, %v1143
    %v1218 = vpack.c.b16 %v1148, %v1146
    %v1219 = vpack.c.b16 %v1149, %v1147
    %v1220 = vpack.c.b16 %v1152, %v1150
    %v1221 = vpack.c.b16 %v1153, %v1151
    %v1222 = vpack.c.b16 %v1156, %v1154
    %v1223 = vpack.c.b16 %v1157, %v1155
    %v1224 = vpack.c.b16 %v1160, %v1158
    %v1225 = vpack.c.b16 %v1161, %v1159
    %1290 = vmatpush.bf16.msra.mxu0 %v1176
    %1291 = vmatpush.bf16.msra.mxu0 %v1174
    %1292 = vmatpush.bf16.msra.mxu0 %v1172
    %1293 = vmatpush.bf16.msra.mxu0 %v1170
    %1294 = vmatpush.bf16.msra.mxu0 %v1168
    %1295 = vmatpush.bf16.msra.mxu0 %v1166
    %1296 = vmatpush.bf16.msra.mxu0 %v1164
    %1297 = vmatpush.bf16.msra.mxu0 %v1162
    %1298 = vmatmul.bf16.gmra.mxu0 %v902
    %v1299 = vpop.f32.mrf.mxu0
    %v1300 = vadd.f32 0.0, %v1299
    %v1301 = vpop.f32.mrf.mxu0
    %1302 = vdwg.mxu0
    %1303 = vmatpush.bf16.msra.mxu0 %v1192
    %1304 = vmatpush.bf16.msra.mxu0 %v1190
    %1305 = vmatpush.bf16.msra.mxu0 %v1188
    %1306 = vmatpush.bf16.msra.mxu0 %v1186
    %1307 = vmatpush.bf16.msra.mxu0 %v1184
    %1308 = vmatpush.bf16.msra.mxu0 %v1182
    %1309 = vmatpush.bf16.msra.mxu0 %v1180
    %1310 = vmatpush.bf16.msra.mxu0 %v1178
    %1311 = vmatmul.bf16.gmra.mxu0 %v903
    %v1312 = vpop.f32.mrf.mxu0
    %v1313 = vadd.f32 %v1300, %v1312
    %v1314 = vpop.f32.mrf.mxu0
    %1315 = vdwg.mxu0
    %1316 = vmatpush.bf16.msra.mxu0 %v1208
    %1317 = vmatpush.bf16.msra.mxu0 %v1206
    %1318 = vmatpush.bf16.msra.mxu0 %v1204
    %1319 = vmatpush.bf16.msra.mxu0 %v1202
    %1320 = vmatpush.bf16.msra.mxu0 %v1200
    %1321 = vmatpush.bf16.msra.mxu0 %v1198
    %1322 = vmatpush.bf16.msra.mxu0 %v1196
    %1323 = vmatpush.bf16.msra.mxu0 %v1194
    %1324 = vmatmul.bf16.gmra.mxu0 %v904
    %v1325 = vpop.f32.mrf.mxu0
    %v1326 = vadd.f32 %v1313, %v1325
    %v1327 = vpop.f32.mrf.mxu0
    %1328 = vdwg.mxu0
    %1329 = vmatpush.bf16.msra.mxu0 %v1224
    %1330 = vmatpush.bf16.msra.mxu0 %v1222
    %1331 = vmatpush.bf16.msra.mxu0 %v1220
    %1332 = vmatpush.bf16.msra.mxu0 %v1218
    %1333 = vmatpush.bf16.msra.mxu0 %v1216
    %1334 = vmatpush.bf16.msra.mxu0 %v1214
    %1335 = vmatpush.bf16.msra.mxu0 %v1212
    %1336 = vmatpush.bf16.msra.mxu0 %v1210
    %1337 = vmatmul.bf16.gmra.mxu0 %v905
    %v1338 = vpop.f32.mrf.mxu0
    %v1339 = vadd.f32 %v1326, %v1338
    %v1340 = vpop.f32.mrf.mxu0
    %1341 = vdwg.mxu0
    %1342 = vmatpush.bf16.msra.mxu0 %v1177
    %1343 = vmatpush.bf16.msra.mxu0 %v1175
    %1344 = vmatpush.bf16.msra.mxu0 %v1173
    %1345 = vmatpush.bf16.msra.mxu0 %v1171
    %1346 = vmatpush.bf16.msra.mxu0 %v1169
    %1347 = vmatpush.bf16.msra.mxu0 %v1167
    %1348 = vmatpush.bf16.msra.mxu0 %v1165
    %1349 = vmatpush.bf16.msra.mxu0 %v1163
    %1350 = vmatmul.bf16.gmra.mxu0 %v902
    %v1351 = vpop.f32.mrf.mxu0
    %v1352 = vadd.f32 0.0, %v1351
    %v1353 = vpop.f32.mrf.mxu0
    %1354 = vdwg.mxu0
    %1355 = vmatpush.bf16.msra.mxu0 %v1193
    %1356 = vmatpush.bf16.msra.mxu0 %v1191
    %1357 = vmatpush.bf16.msra.mxu0 %v1189
    %1358 = vmatpush.bf16.msra.mxu0 %v1187
    %1359 = vmatpush.bf16.msra.mxu0 %v1185
    %1360 = vmatpush.bf16.msra.mxu0 %v1183
    %1361 = vmatpush.bf16.msra.mxu0 %v1181
    %1362 = vmatpush.bf16.msra.mxu0 %v1179
    %1363 = vmatmul.bf16.gmra.mxu0 %v903
    %v1364 = vpop.f32.mrf.mxu0
    %v1365 = vadd.f32 %v1352, %v1364
    %v1366 = vpop.f32.mrf.mxu0
    %1367 = vdwg.mxu0
    %1368 = vmatpush.bf16.msra.mxu0 %v1209
    %1369 = vmatpush.bf16.msra.mxu0 %v1207
    %1370 = vmatpush.bf16.msra.mxu0 %v1205
    %1371 = vmatpush.bf16.msra.mxu0 %v1203
    %1372 = vmatpush.bf16.msra.mxu0 %v1201
    %1373 = vmatpush.bf16.msra.mxu0 %v1199
    %1374 = vmatpush.bf16.msra.mxu0 %v1197
    %1375 = vmatpush.bf16.msra.mxu0 %v1195
    %1376 = vmatmul.bf16.gmra.mxu0 %v904
    %v1377 = vpop.f32.mrf.mxu0
    %v1378 = vadd.f32 %v1365, %v1377
    %v1379 = vpop.f32.mrf.mxu0
    %1380 = vdwg.mxu0
    %1381 = vmatpush.bf16.msra.mxu0 %v1225
    %1382 = vmatpush.bf16.msra.mxu0 %v1223
    %1383 = vmatpush.bf16.msra.mxu0 %v1221
    %1384 = vmatpush.bf16.msra.mxu0 %v1219
    %1385 = vmatpush.bf16.msra.mxu0 %v1217
    %1386 = vmatpush.bf16.msra.mxu0 %v1215
    %1387 = vmatpush.bf16.msra.mxu0 %v1213
    %1388 = vmatpush.bf16.msra.mxu0 %v1211
    %1389 = vmatmul.bf16.gmra.mxu0 %v905
    %v1390 = vpop.f32.mrf.mxu0
    %v1391 = vadd.f32 %v1378, %v1390
    %v1392 = vpop.f32.mrf.mxu0
    %1393 = vdwg.mxu0
    %v1394 = vmax.f32 %v1339, %v1391
    %1395 = vrot.lane.b32.xlu0 %v1394, 64
    %v1396 = vpop.permute.xlu0 %1395
    %v1397 = vmax.f32 %v1394, %v1396
    %v1398 = vld [vmem:[%s5] sm:$0x1]
    %v1400 = vperm.slane %v1398, 0
    %v1402 = vadd.f32 %v1397, %v1400
    %v1403 = vmax.f32 %v1402, 0.0
    %1404 = vst [vmem:[#allocation3] sm:$0x1] 0.0
    %1405 = vst [vmem:[#allocation3 + $0x1] sm:$0x7f] %v1403
    %1406 = vst [vmem:[#allocation3 + $0x8] sm:$0x1] 0.0
    %v1407 = vld [vmem:[#allocation3] ss:$2 sm:$0x7]
    %s1408 = scalar_lea.vmem [#allocation3], 1
    %v1409 = vld [vmem:[%s1408] ss:$2 sm:$0x7]
    %s1410 = scalar_lea.vmem [#allocation3], 2
    %v1411 = vld [vmem:[%s1410] ss:$2 sm:$0x7]
    %s1412 = scalar_lea.vmem [#allocation3], 3
    %v1413 = vld [vmem:[%s1412] ss:$2 sm:$0x7]
    %v1414 = vpack.c.bf16 %v1407, %v1407
    %v1415 = vpack.c.bf16 %v1409, %v1409
    %v1416 = vpack.c.bf16 %v1411, %v1411
    %v1417 = vpack.c.bf16 %v1413, %v1413
    %v1418 = vld [vmem:[#allocation9] sm:$0xff]
    %v1419 = vld [vmem:[#allocation9 + $0x8] sm:$0xff]
    %v1420 = vld [vmem:[#allocation9 + $0x10] sm:$0xff]
    %v1421 = vld [vmem:[#allocation9 + $0x18] sm:$0xff]
    %v1422 = vld [vmem:[#allocation9 + $0x20] sm:$0xff]
    %v1423 = vld [vmem:[#allocation9 + $0x28] sm:$0xff]
    %v1424 = vld [vmem:[#allocation9 + $0x30] sm:$0xff]
    %v1425 = vld [vmem:[#allocation9 + $0x38] sm:$0xff]
    %v1426 = vld [vmem:[#allocation9 + $0x40] sm:$0xff]
    %v1427 = vld [vmem:[#allocation9 + $0x48] sm:$0xff]
    %v1428 = vld [vmem:[#allocation9 + $0x50] sm:$0xff]
    %v1429 = vld [vmem:[#allocation9 + $0x58] sm:$0xff]
    %v1430 = vld [vmem:[#allocation9 + $0x60] sm:$0xff]
    %v1431 = vld [vmem:[#allocation9 + $0x68] sm:$0xff]
    %v1432 = vld [vmem:[#allocation9 + $0x70] sm:$0xff]
    %v1433 = vld [vmem:[#allocation9 + $0x78] sm:$0xff]
    %v1434 = vld [vmem:[#allocation9 + $0x80] sm:$0xff]
    %v1435 = vld [vmem:[#allocation9 + $0x88] sm:$0xff]
    %v1436 = vld [vmem:[#allocation9 + $0x90] sm:$0xff]
    %v1437 = vld [vmem:[#allocation9 + $0x98] sm:$0xff]
    %v1438 = vld [vmem:[#allocation9 + $0xa0] sm:$0xff]
    %v1439 = vld [vmem:[#allocation9 + $0xa8] sm:$0xff]
    %v1440 = vld [vmem:[#allocation9 + $0xb0] sm:$0xff]
    %v1441 = vld [vmem:[#allocation9 + $0xb8] sm:$0xff]
    %v1442 = vld [vmem:[#allocation9 + $0xc0] sm:$0xff]
    %v1443 = vld [vmem:[#allocation9 + $0xc8] sm:$0xff]
    %v1444 = vld [vmem:[#allocation9 + $0xd0] sm:$0xff]
    %v1445 = vld [vmem:[#allocation9 + $0xd8] sm:$0xff]
    %v1446 = vld [vmem:[#allocation9 + $0xe0] sm:$0xff]
    %v1447 = vld [vmem:[#allocation9 + $0xe8] sm:$0xff]
    %v1448 = vld [vmem:[#allocation9 + $0xf0] sm:$0xff]
    %v1449 = vld [vmem:[#allocation9 + $0xf8] sm:$0xff]
    %v1450 = vld [vmem:[#allocation9 + $0x100] sm:$0xff]
    %v1451 = vld [vmem:[#allocation9 + $0x108] sm:$0xff]
    %v1452 = vld [vmem:[#allocation9 + $0x110] sm:$0xff]
    %v1453 = vld [vmem:[#allocation9 + $0x118] sm:$0xff]
    %v1454 = vld [vmem:[#allocation9 + $0x120] sm:$0xff]
    %v1455 = vld [vmem:[#allocation9 + $0x128] sm:$0xff]
    %v1456 = vld [vmem:[#allocation9 + $0x130] sm:$0xff]
    %v1457 = vld [vmem:[#allocation9 + $0x138] sm:$0xff]
    %v1458 = vld [vmem:[#allocation9 + $0x140] sm:$0xff]
    %v1459 = vld [vmem:[#allocation9 + $0x148] sm:$0xff]
    %v1460 = vld [vmem:[#allocation9 + $0x150] sm:$0xff]
    %v1461 = vld [vmem:[#allocation9 + $0x158] sm:$0xff]
    %v1462 = vld [vmem:[#allocation9 + $0x160] sm:$0xff]
    %v1463 = vld [vmem:[#allocation9 + $0x168] sm:$0xff]
    %v1464 = vld [vmem:[#allocation9 + $0x170] sm:$0xff]
    %v1465 = vld [vmem:[#allocation9 + $0x178] sm:$0xff]
    %v1466 = vld [vmem:[#allocation9 + $0x180] sm:$0xff]
    %v1467 = vld [vmem:[#allocation9 + $0x188] sm:$0xff]
    %v1468 = vld [vmem:[#allocation9 + $0x190] sm:$0xff]
    %v1469 = vld [vmem:[#allocation9 + $0x198] sm:$0xff]
    %v1470 = vld [vmem:[#allocation9 + $0x1a0] sm:$0xff]
    %v1471 = vld [vmem:[#allocation9 + $0x1a8] sm:$0xff]
    %v1472 = vld [vmem:[#allocation9 + $0x1b0] sm:$0xff]
    %v1473 = vld [vmem:[#allocation9 + $0x1b8] sm:$0xff]
    %v1474 = vld [vmem:[#allocation9 + $0x1c0] sm:$0xff]
    %v1475 = vld [vmem:[#allocation9 + $0x1c8] sm:$0xff]
    %v1476 = vld [vmem:[#allocation9 + $0x1d0] sm:$0xff]
    %v1477 = vld [vmem:[#allocation9 + $0x1d8] sm:$0xff]
    %v1478 = vld [vmem:[#allocation9 + $0x1e0] sm:$0xff]
    %v1479 = vld [vmem:[#allocation9 + $0x1e8] sm:$0xff]
    %v1480 = vld [vmem:[#allocation9 + $0x1f0] sm:$0xff]
    %v1481 = vld [vmem:[#allocation9 + $0x1f8] sm:$0xff]
    %v1546 = vunpack.c.l.b16 %v1418
    %v1547 = vunpack.c.h.b16 %v1418
    %v1548 = vunpack.c.l.b16 %v1419
    %v1549 = vunpack.c.h.b16 %v1419
    %v1550 = vunpack.c.l.b16 %v1420
    %v1551 = vunpack.c.h.b16 %v1420
    %v1552 = vunpack.c.l.b16 %v1421
    %v1553 = vunpack.c.h.b16 %v1421
    %v1554 = vunpack.c.l.b16 %v1422
    %v1555 = vunpack.c.h.b16 %v1422
    %v1556 = vunpack.c.l.b16 %v1423
    %v1557 = vunpack.c.h.b16 %v1423
    %v1558 = vunpack.c.l.b16 %v1424
    %v1559 = vunpack.c.h.b16 %v1424
    %v1560 = vunpack.c.l.b16 %v1425
    %v1561 = vunpack.c.h.b16 %v1425
    %v1562 = vunpack.c.l.b16 %v1426
    %v1563 = vunpack.c.h.b16 %v1426
    %v1564 = vunpack.c.l.b16 %v1427
    %v1565 = vunpack.c.h.b16 %v1427
    %v1566 = vunpack.c.l.b16 %v1428
    %v1567 = vunpack.c.h.b16 %v1428
    %v1568 = vunpack.c.l.b16 %v1429
    %v1569 = vunpack.c.h.b16 %v1429
    %v1570 = vunpack.c.l.b16 %v1430
    %v1571 = vunpack.c.h.b16 %v1430
    %v1572 = vunpack.c.l.b16 %v1431
    %v1573 = vunpack.c.h.b16 %v1431
    %v1574 = vunpack.c.l.b16 %v1432
    %v1575 = vunpack.c.h.b16 %v1432
    %v1576 = vunpack.c.l.b16 %v1433
    %v1577 = vunpack.c.h.b16 %v1433
    %v1578 = vunpack.c.l.b16 %v1434
    %v1579 = vunpack.c.h.b16 %v1434
    %v1580 = vunpack.c.l.b16 %v1435
    %v1581 = vunpack.c.h.b16 %v1435
    %v1582 = vunpack.c.l.b16 %v1436
    %v1583 = vunpack.c.h.b16 %v1436
    %v1584 = vunpack.c.l.b16 %v1437
    %v1585 = vunpack.c.h.b16 %v1437
    %v1586 = vunpack.c.l.b16 %v1438
    %v1587 = vunpack.c.h.b16 %v1438
    %v1588 = vunpack.c.l.b16 %v1439
    %v1589 = vunpack.c.h.b16 %v1439
    %v1590 = vunpack.c.l.b16 %v1440
    %v1591 = vunpack.c.h.b16 %v1440
    %v1592 = vunpack.c.l.b16 %v1441
    %v1593 = vunpack.c.h.b16 %v1441
    %v1594 = vunpack.c.l.b16 %v1442
    %v1595 = vunpack.c.h.b16 %v1442
    %v1596 = vunpack.c.l.b16 %v1443
    %v1597 = vunpack.c.h.b16 %v1443
    %v1598 = vunpack.c.l.b16 %v1444
    %v1599 = vunpack.c.h.b16 %v1444
    %v1600 = vunpack.c.l.b16 %v1445
    %v1601 = vunpack.c.h.b16 %v1445
    %v1602 = vunpack.c.l.b16 %v1446
    %v1603 = vunpack.c.h.b16 %v1446
    %v1604 = vunpack.c.l.b16 %v1447
    %v1605 = vunpack.c.h.b16 %v1447
    %v1606 = vunpack.c.l.b16 %v1448
    %v1607 = vunpack.c.h.b16 %v1448
    %v1608 = vunpack.c.l.b16 %v1449
    %v1609 = vunpack.c.h.b16 %v1449
    %v1610 = vunpack.c.l.b16 %v1450
    %v1611 = vunpack.c.h.b16 %v1450
    %v1612 = vunpack.c.l.b16 %v1451
    %v1613 = vunpack.c.h.b16 %v1451
    %v1614 = vunpack.c.l.b16 %v1452
    %v1615 = vunpack.c.h.b16 %v1452
    %v1616 = vunpack.c.l.b16 %v1453
    %v1617 = vunpack.c.h.b16 %v1453
    %v1618 = vunpack.c.l.b16 %v1454
    %v1619 = vunpack.c.h.b16 %v1454
    %v1620 = vunpack.c.l.b16 %v1455
    %v1621 = vunpack.c.h.b16 %v1455
    %v1622 = vunpack.c.l.b16 %v1456
    %v1623 = vunpack.c.h.b16 %v1456
    %v1624 = vunpack.c.l.b16 %v1457
    %v1625 = vunpack.c.h.b16 %v1457
    %v1626 = vunpack.c.l.b16 %v1458
    %v1627 = vunpack.c.h.b16 %v1458
    %v1628 = vunpack.c.l.b16 %v1459
    %v1629 = vunpack.c.h.b16 %v1459
    %v1630 = vunpack.c.l.b16 %v1460
    %v1631 = vunpack.c.h.b16 %v1460
    %v1632 = vunpack.c.l.b16 %v1461
    %v1633 = vunpack.c.h.b16 %v1461
    %v1634 = vunpack.c.l.b16 %v1462
    %v1635 = vunpack.c.h.b16 %v1462
    %v1636 = vunpack.c.l.b16 %v1463
    %v1637 = vunpack.c.h.b16 %v1463
    %v1638 = vunpack.c.l.b16 %v1464
    %v1639 = vunpack.c.h.b16 %v1464
    %v1640 = vunpack.c.l.b16 %v1465
    %v1641 = vunpack.c.h.b16 %v1465
    %v1642 = vunpack.c.l.b16 %v1466
    %v1643 = vunpack.c.h.b16 %v1466
    %v1644 = vunpack.c.l.b16 %v1467
    %v1645 = vunpack.c.h.b16 %v1467
    %v1646 = vunpack.c.l.b16 %v1468
    %v1647 = vunpack.c.h.b16 %v1468
    %v1648 = vunpack.c.l.b16 %v1469
    %v1649 = vunpack.c.h.b16 %v1469
    %v1650 = vunpack.c.l.b16 %v1470
    %v1651 = vunpack.c.h.b16 %v1470
    %v1652 = vunpack.c.l.b16 %v1471
    %v1653 = vunpack.c.h.b16 %v1471
    %v1654 = vunpack.c.l.b16 %v1472
    %v1655 = vunpack.c.h.b16 %v1472
    %v1656 = vunpack.c.l.b16 %v1473
    %v1657 = vunpack.c.h.b16 %v1473
    %v1658 = vunpack.c.l.b16 %v1474
    %v1659 = vunpack.c.h.b16 %v1474
    %v1660 = vunpack.c.l.b16 %v1475
    %v1661 = vunpack.c.h.b16 %v1475
    %v1662 = vunpack.c.l.b16 %v1476
    %v1663 = vunpack.c.h.b16 %v1476
    %v1664 = vunpack.c.l.b16 %v1477
    %v1665 = vunpack.c.h.b16 %v1477
    %v1666 = vunpack.c.l.b16 %v1478
    %v1667 = vunpack.c.h.b16 %v1478
    %v1668 = vunpack.c.l.b16 %v1479
    %v1669 = vunpack.c.h.b16 %v1479
    %v1670 = vunpack.c.l.b16 %v1480
    %v1671 = vunpack.c.h.b16 %v1480
    %v1672 = vunpack.c.l.b16 %v1481
    %v1673 = vunpack.c.h.b16 %v1481
    %v1674 = vpack.c.b16 %v1548, %v1546
    %v1675 = vpack.c.b16 %v1549, %v1547
    %v1676 = vpack.c.b16 %v1552, %v1550
    %v1677 = vpack.c.b16 %v1553, %v1551
    %v1678 = vpack.c.b16 %v1556, %v1554
    %v1679 = vpack.c.b16 %v1557, %v1555
    %v1680 = vpack.c.b16 %v1560, %v1558
    %v1681 = vpack.c.b16 %v1561, %v1559
    %v1682 = vpack.c.b16 %v1564, %v1562
    %v1683 = vpack.c.b16 %v1565, %v1563
    %v1684 = vpack.c.b16 %v1568, %v1566
    %v1685 = vpack.c.b16 %v1569, %v1567
    %v1686 = vpack.c.b16 %v1572, %v1570
    %v1687 = vpack.c.b16 %v1573, %v1571
    %v1688 = vpack.c.b16 %v1576, %v1574
    %v1689 = vpack.c.b16 %v1577, %v1575
    %v1690 = vpack.c.b16 %v1580, %v1578
    %v1691 = vpack.c.b16 %v1581, %v1579
    %v1692 = vpack.c.b16 %v1584, %v1582
    %v1693 = vpack.c.b16 %v1585, %v1583
    %v1694 = vpack.c.b16 %v1588, %v1586
    %v1695 = vpack.c.b16 %v1589, %v1587
    %v1696 = vpack.c.b16 %v1592, %v1590
    %v1697 = vpack.c.b16 %v1593, %v1591
    %v1698 = vpack.c.b16 %v1596, %v1594
    %v1699 = vpack.c.b16 %v1597, %v1595
    %v1700 = vpack.c.b16 %v1600, %v1598
    %v1701 = vpack.c.b16 %v1601, %v1599
    %v1702 = vpack.c.b16 %v1604, %v1602
    %v1703 = vpack.c.b16 %v1605, %v1603
    %v1704 = vpack.c.b16 %v1608, %v1606
    %v1705 = vpack.c.b16 %v1609, %v1607
    %v1706 = vpack.c.b16 %v1612, %v1610
    %v1707 = vpack.c.b16 %v1613, %v1611
    %v1708 = vpack.c.b16 %v1616, %v1614
    %v1709 = vpack.c.b16 %v1617, %v1615
    %v1710 = vpack.c.b16 %v1620, %v1618
    %v1711 = vpack.c.b16 %v1621, %v1619
    %v1712 = vpack.c.b16 %v1624, %v1622
    %v1713 = vpack.c.b16 %v1625, %v1623
    %v1714 = vpack.c.b16 %v1628, %v1626
    %v1715 = vpack.c.b16 %v1629, %v1627
    %v1716 = vpack.c.b16 %v1632, %v1630
    %v1717 = vpack.c.b16 %v1633, %v1631
    %v1718 = vpack.c.b16 %v1636, %v1634
    %v1719 = vpack.c.b16 %v1637, %v1635
    %v1720 = vpack.c.b16 %v1640, %v1638
    %v1721 = vpack.c.b16 %v1641, %v1639
    %v1722 = vpack.c.b16 %v1644, %v1642
    %v1723 = vpack.c.b16 %v1645, %v1643
    %v1724 = vpack.c.b16 %v1648, %v1646
    %v1725 = vpack.c.b16 %v1649, %v1647
    %v1726 = vpack.c.b16 %v1652, %v1650
    %v1727 = vpack.c.b16 %v1653, %v1651
    %v1728 = vpack.c.b16 %v1656, %v1654
    %v1729 = vpack.c.b16 %v1657, %v1655
    %v1730 = vpack.c.b16 %v1660, %v1658
    %v1731 = vpack.c.b16 %v1661, %v1659
    %v1732 = vpack.c.b16 %v1664, %v1662
    %v1733 = vpack.c.b16 %v1665, %v1663
    %v1734 = vpack.c.b16 %v1668, %v1666
    %v1735 = vpack.c.b16 %v1669, %v1667
    %v1736 = vpack.c.b16 %v1672, %v1670
    %v1737 = vpack.c.b16 %v1673, %v1671
    %1802 = vmatpush.bf16.msra.mxu0 %v1688
    %1803 = vmatpush.bf16.msra.mxu0 %v1686
    %1804 = vmatpush.bf16.msra.mxu0 %v1684
    %1805 = vmatpush.bf16.msra.mxu0 %v1682
    %1806 = vmatpush.bf16.msra.mxu0 %v1680
    %1807 = vmatpush.bf16.msra.mxu0 %v1678
    %1808 = vmatpush.bf16.msra.mxu0 %v1676
    %1809 = vmatpush.bf16.msra.mxu0 %v1674
    %1810 = vmatmul.bf16.gmra.mxu0 %v1414
    %v1811 = vpop.f32.mrf.mxu0
    %v1812 = vadd.f32 0.0, %v1811
    %v1813 = vpop.f32.mrf.mxu0
    %1814 = vdwg.mxu0
    %1815 = vmatpush.bf16.msra.mxu0 %v1704
    %1816 = vmatpush.bf16.msra.mxu0 %v1702
    %1817 = vmatpush.bf16.msra.mxu0 %v1700
    %1818 = vmatpush.bf16.msra.mxu0 %v1698
    %1819 = vmatpush.bf16.msra.mxu0 %v1696
    %1820 = vmatpush.bf16.msra.mxu0 %v1694
    %1821 = vmatpush.bf16.msra.mxu0 %v1692
    %1822 = vmatpush.bf16.msra.mxu0 %v1690
    %1823 = vmatmul.bf16.gmra.mxu0 %v1415
    %v1824 = vpop.f32.mrf.mxu0
    %v1825 = vadd.f32 %v1812, %v1824
    %v1826 = vpop.f32.mrf.mxu0
    %1827 = vdwg.mxu0
    %1828 = vmatpush.bf16.msra.mxu0 %v1720
    %1829 = vmatpush.bf16.msra.mxu0 %v1718
    %1830 = vmatpush.bf16.msra.mxu0 %v1716
    %1831 = vmatpush.bf16.msra.mxu0 %v1714
    %1832 = vmatpush.bf16.msra.mxu0 %v1712
    %1833 = vmatpush.bf16.msra.mxu0 %v1710
    %1834 = vmatpush.bf16.msra.mxu0 %v1708
    %1835 = vmatpush.bf16.msra.mxu0 %v1706
    %1836 = vmatmul.bf16.gmra.mxu0 %v1416
    %v1837 = vpop.f32.mrf.mxu0
    %v1838 = vadd.f32 %v1825, %v1837
    %v1839 = vpop.f32.mrf.mxu0
    %1840 = vdwg.mxu0
    %1841 = vmatpush.bf16.msra.mxu0 %v1736
    %1842 = vmatpush.bf16.msra.mxu0 %v1734
    %1843 = vmatpush.bf16.msra.mxu0 %v1732
    %1844 = vmatpush.bf16.msra.mxu0 %v1730
    %1845 = vmatpush.bf16.msra.mxu0 %v1728
    %1846 = vmatpush.bf16.msra.mxu0 %v1726
    %1847 = vmatpush.bf16.msra.mxu0 %v1724
    %1848 = vmatpush.bf16.msra.mxu0 %v1722
    %1849 = vmatmul.bf16.gmra.mxu0 %v1417
    %v1850 = vpop.f32.mrf.mxu0
    %v1851 = vadd.f32 %v1838, %v1850
    %v1852 = vpop.f32.mrf.mxu0
    %1853 = vdwg.mxu0
    %1854 = vmatpush.bf16.msra.mxu0 %v1689
    %1855 = vmatpush.bf16.msra.mxu0 %v1687
    %1856 = vmatpush.bf16.msra.mxu0 %v1685
    %1857 = vmatpush.bf16.msra.mxu0 %v1683
    %1858 = vmatpush.bf16.msra.mxu0 %v1681
    %1859 = vmatpush.bf16.msra.mxu0 %v1679
    %1860 = vmatpush.bf16.msra.mxu0 %v1677
    %1861 = vmatpush.bf16.msra.mxu0 %v1675
    %1862 = vmatmul.bf16.gmra.mxu0 %v1414
    %v1863 = vpop.f32.mrf.mxu0
    %v1864 = vadd.f32 0.0, %v1863
    %v1865 = vpop.f32.mrf.mxu0
    %1866 = vdwg.mxu0
    %1867 = vmatpush.bf16.msra.mxu0 %v1705
    %1868 = vmatpush.bf16.msra.mxu0 %v1703
    %1869 = vmatpush.bf16.msra.mxu0 %v1701
    %1870 = vmatpush.bf16.msra.mxu0 %v1699
    %1871 = vmatpush.bf16.msra.mxu0 %v1697
    %1872 = vmatpush.bf16.msra.mxu0 %v1695
    %1873 = vmatpush.bf16.msra.mxu0 %v1693
    %1874 = vmatpush.bf16.msra.mxu0 %v1691
    %1875 = vmatmul.bf16.gmra.mxu0 %v1415
    %v1876 = vpop.f32.mrf.mxu0
    %v1877 = vadd.f32 %v1864, %v1876
    %v1878 = vpop.f32.mrf.mxu0
    %1879 = vdwg.mxu0
    %1880 = vmatpush.bf16.msra.mxu0 %v1721
    %1881 = vmatpush.bf16.msra.mxu0 %v1719
    %1882 = vmatpush.bf16.msra.mxu0 %v1717
    %1883 = vmatpush.bf16.msra.mxu0 %v1715
    %1884 = vmatpush.bf16.msra.mxu0 %v1713
    %1885 = vmatpush.bf16.msra.mxu0 %v1711
    %1886 = vmatpush.bf16.msra.mxu0 %v1709
    %1887 = vmatpush.bf16.msra.mxu0 %v1707
    %1888 = vmatmul.bf16.gmra.mxu0 %v1416
    %v1889 = vpop.f32.mrf.mxu0
    %v1890 = vadd.f32 %v1877, %v1889
    %v1891 = vpop.f32.mrf.mxu0
    %1892 = vdwg.mxu0
    %1893 = vmatpush.bf16.msra.mxu0 %v1737
    %1894 = vmatpush.bf16.msra.mxu0 %v1735
    %1895 = vmatpush.bf16.msra.mxu0 %v1733
    %1896 = vmatpush.bf16.msra.mxu0 %v1731
    %1897 = vmatpush.bf16.msra.mxu0 %v1729
    %1898 = vmatpush.bf16.msra.mxu0 %v1727
    %1899 = vmatpush.bf16.msra.mxu0 %v1725
    %1900 = vmatpush.bf16.msra.mxu0 %v1723
    %1901 = vmatmul.bf16.gmra.mxu0 %v1417
    %v1902 = vpop.f32.mrf.mxu0
    %v1903 = vadd.f32 %v1890, %v1902
    %v1904 = vpop.f32.mrf.mxu0
    %1905 = vdwg.mxu0
    %v1906 = vmax.f32 %v1851, %v1903
    %1907 = vrot.lane.b32.xlu0 %v1906, 64
    %v1908 = vpop.permute.xlu0 %1907
    %v1909 = vmax.f32 %v1906, %v1908
    %v1910 = vld [vmem:[%s6] sm:$0x1]
    %v1912 = vperm.slane %v1910, 0
    %v1914 = vadd.f32 %v1909, %v1912
    %v1915 = vmax.f32 %v1914, 0.0
    %v1917 = vrot.slane %v1915, 1
    %v1919 = vrot.slane %v1915, 2
    %v1921 = vpack.c.bf16 %v1915, %v1915
    %v1922 = vpack.c.bf16 %v1917, %v1917
    %v1923 = vpack.c.bf16 %v1919, %v1919
    %v1924 = vld [vmem:[#allocation10] sm:$0xf]
    %v1925 = vld [vmem:[#allocation10 + $0x4] sm:$0xf]
    %v1926 = vld [vmem:[#allocation10 + $0x8] sm:$0xf]
    %v1927 = vld [vmem:[#allocation10 + $0xc] sm:$0xf]
    %v1928 = vld [vmem:[#allocation10 + $0x10] sm:$0xf]
    %v1929 = vld [vmem:[#allocation10 + $0x14] sm:$0xf]
    %v1930 = vld [vmem:[#allocation10 + $0x18] sm:$0xf]
    %v1931 = vld [vmem:[#allocation10 + $0x1c] sm:$0xf]
    %v1932 = vld [vmem:[#allocation10 + $0x20] sm:$0xf]
    %v1933 = vld [vmem:[#allocation10 + $0x24] sm:$0xf]
    %v1934 = vld [vmem:[#allocation10 + $0x28] sm:$0xf]
    %v1935 = vld [vmem:[#allocation10 + $0x2c] sm:$0xf]
    %v1936 = vld [vmem:[#allocation10 + $0x30] sm:$0xf]
    %v1937 = vld [vmem:[#allocation10 + $0x34] sm:$0xf]
    %v1938 = vld [vmem:[#allocation10 + $0x38] sm:$0xf]
    %v1939 = vld [vmem:[#allocation10 + $0x3c] sm:$0xf]
    %v1940 = vld [vmem:[#allocation10 + $0x40] sm:$0xf]
    %v1941 = vld [vmem:[#allocation10 + $0x44] sm:$0xf]
    %v1942 = vld [vmem:[#allocation10 + $0x48] sm:$0xf]
    %v1943 = vld [vmem:[#allocation10 + $0x4c] sm:$0xf]
    %v1944 = vld [vmem:[#allocation10 + $0x50] sm:$0xf]
    %v1945 = vld [vmem:[#allocation10 + $0x54] sm:$0xf]
    %v1946 = vld [vmem:[#allocation10 + $0x58] sm:$0xf]
    %v1947 = vld [vmem:[#allocation10 + $0x5c] sm:$0xf]
    %v1948 = vld [vmem:[#allocation10 + $0x60] sm:$0xf]
    %v1949 = vld [vmem:[#allocation10 + $0x64] sm:$0xf]
    %v1950 = vld [vmem:[#allocation10 + $0x68] sm:$0xf]
    %v1951 = vld [vmem:[#allocation10 + $0x6c] sm:$0xf]
    %v1952 = vld [vmem:[#allocation10 + $0x70] sm:$0xf]
    %v1953 = vld [vmem:[#allocation10 + $0x74] sm:$0xf]
    %v1954 = vld [vmem:[#allocation10 + $0x78] sm:$0xf]
    %v1955 = vld [vmem:[#allocation10 + $0x7c] sm:$0xf]
    %v1956 = vld [vmem:[#allocation10 + $0x80] sm:$0xf]
    %v1957 = vld [vmem:[#allocation10 + $0x84] sm:$0xf]
    %v1958 = vld [vmem:[#allocation10 + $0x88] sm:$0xf]
    %v1959 = vld [vmem:[#allocation10 + $0x8c] sm:$0xf]
    %v1960 = vld [vmem:[#allocation10 + $0x90] sm:$0xf]
    %v1961 = vld [vmem:[#allocation10 + $0x94] sm:$0xf]
    %v1962 = vld [vmem:[#allocation10 + $0x98] sm:$0xf]
    %v1963 = vld [vmem:[#allocation10 + $0x9c] sm:$0xf]
    %v1964 = vld [vmem:[#allocation10 + $0xa0] sm:$0xf]
    %v1965 = vld [vmem:[#allocation10 + $0xa4] sm:$0xf]
    %v1966 = vld [vmem:[#allocation10 + $0xa8] sm:$0xf]
    %v1967 = vld [vmem:[#allocation10 + $0xac] sm:$0xf]
    %v1968 = vld [vmem:[#allocation10 + $0xb0] sm:$0xf]
    %v1969 = vld [vmem:[#allocation10 + $0xb4] sm:$0xf]
    %v1970 = vld [vmem:[#allocation10 + $0xb8] sm:$0xf]
    %v1971 = vld [vmem:[#allocation10 + $0xbc] sm:$0xf]
    %v1972 = vld [vmem:[%s8] sm:$0x1]
    %v2021 = vunpack.c.l.b16 %v1924
    %v2022 = vunpack.c.l.b16 %v1925
    %v2023 = vunpack.c.l.b16 %v1926
    %v2024 = vunpack.c.l.b16 %v1927
    %v2025 = vunpack.c.l.b16 %v1928
    %v2026 = vunpack.c.l.b16 %v1929
    %v2027 = vunpack.c.l.b16 %v1930
    %v2028 = vunpack.c.l.b16 %v1931
    %v2029 = vunpack.c.l.b16 %v1932
    %v2030 = vunpack.c.l.b16 %v1933
    %v2031 = vunpack.c.l.b16 %v1934
    %v2032 = vunpack.c.l.b16 %v1935
    %v2033 = vunpack.c.l.b16 %v1936
    %v2034 = vunpack.c.l.b16 %v1937
    %v2035 = vunpack.c.l.b16 %v1938
    %v2036 = vunpack.c.l.b16 %v1939
    %v2037 = vunpack.c.l.b16 %v1940
    %v2038 = vunpack.c.l.b16 %v1941
    %v2039 = vunpack.c.l.b16 %v1942
    %v2040 = vunpack.c.l.b16 %v1943
    %v2041 = vunpack.c.l.b16 %v1944
    %v2042 = vunpack.c.l.b16 %v1945
    %v2043 = vunpack.c.l.b16 %v1946
    %v2044 = vunpack.c.l.b16 %v1947
    %v2045 = vunpack.c.l.b16 %v1948
    %v2046 = vunpack.c.l.b16 %v1949
    %v2047 = vunpack.c.l.b16 %v1950
    %v2048 = vunpack.c.l.b16 %v1951
    %v2049 = vunpack.c.l.b16 %v1952
    %v2050 = vunpack.c.l.b16 %v1953
    %v2051 = vunpack.c.l.b16 %v1954
    %v2052 = vunpack.c.l.b16 %v1955
    %v2053 = vunpack.c.l.b16 %v1956
    %v2054 = vunpack.c.l.b16 %v1957
    %v2055 = vunpack.c.l.b16 %v1958
    %v2056 = vunpack.c.l.b16 %v1959
    %v2057 = vunpack.c.l.b16 %v1960
    %v2058 = vunpack.c.l.b16 %v1961
    %v2059 = vunpack.c.l.b16 %v1962
    %v2060 = vunpack.c.l.b16 %v1963
    %v2061 = vunpack.c.l.b16 %v1964
    %v2062 = vunpack.c.l.b16 %v1965
    %v2063 = vunpack.c.l.b16 %v1966
    %v2064 = vunpack.c.l.b16 %v1967
    %v2065 = vunpack.c.l.b16 %v1968
    %v2066 = vunpack.c.l.b16 %v1969
    %v2067 = vunpack.c.l.b16 %v1970
    %v2068 = vunpack.c.l.b16 %v1971
    %v2069 = vpack.c.b16 %v2022, %v2021
    %v2070 = vpack.c.b16 %v2024, %v2023
    %v2071 = vpack.c.b16 %v2026, %v2025
    %v2072 = vpack.c.b16 %v2028, %v2027
    %v2073 = vpack.c.b16 %v2030, %v2029
    %v2074 = vpack.c.b16 %v2032, %v2031
    %v2075 = vpack.c.b16 %v2034, %v2033
    %v2076 = vpack.c.b16 %v2036, %v2035
    %v2077 = vpack.c.b16 %v2038, %v2037
    %v2078 = vpack.c.b16 %v2040, %v2039
    %v2079 = vpack.c.b16 %v2042, %v2041
    %v2080 = vpack.c.b16 %v2044, %v2043
    %v2081 = vpack.c.b16 %v2046, %v2045
    %v2082 = vpack.c.b16 %v2048, %v2047
    %v2083 = vpack.c.b16 %v2050, %v2049
    %v2084 = vpack.c.b16 %v2052, %v2051
    %v2085 = vpack.c.b16 %v2054, %v2053
    %v2086 = vpack.c.b16 %v2056, %v2055
    %v2087 = vpack.c.b16 %v2058, %v2057
    %v2088 = vpack.c.b16 %v2060, %v2059
    %v2089 = vpack.c.b16 %v2062, %v2061
    %v2090 = vpack.c.b16 %v2064, %v2063
    %v2091 = vpack.c.b16 %v2066, %v2065
    %v2092 = vpack.c.b16 %v2068, %v2067
    %2117 = vmatpush.bf16.msra.mxu0 %v2076
    %2118 = vmatpush.bf16.msra.mxu0 %v2075
    %2119 = vmatpush.bf16.msra.mxu0 %v2074
    %2120 = vmatpush.bf16.msra.mxu0 %v2073
    %2121 = vmatpush.bf16.msra.mxu0 %v2072
    %2122 = vmatpush.bf16.msra.mxu0 %v2071
    %2123 = vmatpush.bf16.msra.mxu0 %v2070
    %2124 = vmatpush.bf16.msra.mxu0 %v2069
    %2125 = vmatmul.bf16.gmra.mxu0 %v1921
    %v2126 = vpop.f32.mrf.mxu0
    %v2127 = vadd.f32 %v1972, %v2126
    %v2128 = vpop.f32.mrf.mxu0
    %2129 = vdwg.mxu0
    %2130 = vmatpush.bf16.msra.mxu0 %v2084
    %2131 = vmatpush.bf16.msra.mxu0 %v2083
    %2132 = vmatpush.bf16.msra.mxu0 %v2082
    %2133 = vmatpush.bf16.msra.mxu0 %v2081
    %2134 = vmatpush.bf16.msra.mxu0 %v2080
    %2135 = vmatpush.bf16.msra.mxu0 %v2079
    %2136 = vmatpush.bf16.msra.mxu0 %v2078
    %2137 = vmatpush.bf16.msra.mxu0 %v2077
    %2138 = vmatmul.bf16.gmra.mxu0 %v1922
    %v2139 = vpop.f32.mrf.mxu0
    %v2140 = vadd.f32 %v2127, %v2139
    %v2141 = vpop.f32.mrf.mxu0
    %2142 = vdwg.mxu0
    %2143 = vmatpush.bf16.msra.mxu0 %v2092
    %2144 = vmatpush.bf16.msra.mxu0 %v2091
    %2145 = vmatpush.bf16.msra.mxu0 %v2090
    %2146 = vmatpush.bf16.msra.mxu0 %v2089
    %2147 = vmatpush.bf16.msra.mxu0 %v2088
    %2148 = vmatpush.bf16.msra.mxu0 %v2087
    %2149 = vmatpush.bf16.msra.mxu0 %v2086
    %2150 = vmatpush.bf16.msra.mxu0 %v2085
    %2151 = vmatmul.bf16.gmra.mxu0 %v1923
    %v2152 = vpop.f32.mrf.mxu0
    %v2153 = vadd.f32 %v2140, %v2152
    %v2154 = vpop.f32.mrf.mxu0
    %2155 = vdwg.mxu0
    %v2156 = vtanh.pop %v2153
    %v2157 = vpack.c.bf16 %v2156, %v2156
    %v2158 = vld [vmem:[%s9] sm:$0xf]
    %v2159 = vld [vmem:[%s9 + $0x4] sm:$0xf]
    %v2160 = vld [vmem:[%s9 + $0x8] sm:$0xf]
    %v2161 = vld [vmem:[%s9 + $0xc] sm:$0xf]
    %v2162 = vld [vmem:[%s9 + $0x10] sm:$0xf]
    %v2163 = vld [vmem:[%s9 + $0x14] sm:$0xf]
    %v2164 = vld [vmem:[%s9 + $0x18] sm:$0xf]
    %v2165 = vld [vmem:[%s9 + $0x1c] sm:$0xf]
    %v2166 = vld [vmem:[%s9 + $0x20] sm:$0xf]
    %v2167 = vld [vmem:[%s9 + $0x24] sm:$0xf]
    %v2168 = vld [vmem:[%s9 + $0x28] sm:$0xf]
    %v2169 = vld [vmem:[%s9 + $0x2c] sm:$0xf]
    %v2170 = vld [vmem:[%s9 + $0x30] sm:$0xf]
    %v2171 = vld [vmem:[%s9 + $0x34] sm:$0xf]
    %v2172 = vld [vmem:[%s9 + $0x38] sm:$0xf]
    %v2173 = vld [vmem:[%s9 + $0x3c] sm:$0xf]
    %v2174 = vld [vmem:[%s10] sm:$0x1]
    %v2191 = vunpack.c.l.b16 %v2158
    %v2192 = vunpack.c.l.b16 %v2159
    %v2193 = vunpack.c.l.b16 %v2160
    %v2194 = vunpack.c.l.b16 %v2161
    %v2195 = vunpack.c.l.b16 %v2162
    %v2196 = vunpack.c.l.b16 %v2163
    %v2197 = vunpack.c.l.b16 %v2164
    %v2198 = vunpack.c.l.b16 %v2165
    %v2199 = vunpack.c.l.b16 %v2166
    %v2200 = vunpack.c.l.b16 %v2167
    %v2201 = vunpack.c.l.b16 %v2168
    %v2202 = vunpack.c.l.b16 %v2169
    %v2203 = vunpack.c.l.b16 %v2170
    %v2204 = vunpack.c.l.b16 %v2171
    %v2205 = vunpack.c.l.b16 %v2172
    %v2206 = vunpack.c.l.b16 %v2173
    %v2207 = vpack.c.b16 %v2192, %v2191
    %v2208 = vpack.c.b16 %v2194, %v2193
    %v2209 = vpack.c.b16 %v2196, %v2195
    %v2210 = vpack.c.b16 %v2198, %v2197
    %v2211 = vpack.c.b16 %v2200, %v2199
    %v2212 = vpack.c.b16 %v2202, %v2201
    %v2213 = vpack.c.b16 %v2204, %v2203
    %v2214 = vpack.c.b16 %v2206, %v2205
    %2223 = vmatpush.bf16.msra.mxu0 %v2214
    %2224 = vmatpush.bf16.msra.mxu0 %v2213
    %2225 = vmatpush.bf16.msra.mxu0 %v2212
    %2226 = vmatpush.bf16.msra.mxu0 %v2211
    %2227 = vmatpush.bf16.msra.mxu0 %v2210
    %2228 = vmatpush.bf16.msra.mxu0 %v2209
    %2229 = vmatpush.bf16.msra.mxu0 %v2208
    %2230 = vmatpush.bf16.msra.mxu0 %v2207
    %2231 = vmatmul.bf16.gmra.mxu0 %v2157
    %v2232 = vpop.f32.mrf.mxu0
    %v2233 = vadd.f32 %v2174, %v2232
    %v2234 = vpop.f32.mrf.mxu0
    %2235 = vdwg.mxu0
    %vm2236 = vcmask 1040384
    %v2237 = vsel %vm2236, %v2233, -inf
    %2238 = vmax.xlane.f32.xlu0 %v2237
    %v2239 = vpop.xlane.xlu0 %2238
    %v2240 = vsub.f32 %v2233, %v2239
    %v2241 = vmul.f32 %v2240, 1.442695
    %v2242 = vpow.pop %v2241
    %v2243 = vsel %vm2236, %v2242, 0.0
    %2244 = vadd.xlane.f32.xlu0 %v2243
    %v2245 = vpop.xlane.xlu0 %2244
    %v2246 = vrcp.pop %v2245
    %v2247 = vmul.f32 %v2245, %v2246
    %v2248 = vsub.f32 1.0, %v2247
    %v2249 = vmul.f32 %v2246, %v2248
    %v2250 = vadd.f32 %v2246, %v2249
    %vm2251 = vweird.f32 %v2245
    %vm2252 = vweird.f32 %v2246
    %vm2253 = vmor %vm2251, %vm2252
    %v2254 = vsel %vm2253, %v2246, %v2250
    %v2255 = vand.u32 2147483647, %v2245
    %vm2256 = vcmp.eq.f32.partialorder %v2255, 8.507059e+37
    %v2257 = vand.u32 %v2245, 2147483648
    %v2258 = vor.u32 1.1754944e-38, %v2257
    %v2259 = vsel %vm2256, %v2258, %v2254
    %v2260 = vmul.f32 %v2242, %v2259
    %2261 = vst [vmem:[#allocation12] sm:$0x1] %v2260
    // Predicated region
    $region62: #{forward.1} parent=1 // pred_check
      _
    $region63: #{forward.1} parent=1 // pred_check_branch
      %2263 = sbr.rel (0) target = $region65
    $region64: #{forward.1} parent=1 // pred_region
      %2265 = vsyncadd [#allocation6], 0
      %s2267 = sshll.u32 [#allocation12], 4
      %s2268 = int_to_ptr.vmem [resolvable:$true] %s2267
      %s2269 = sshll.u32 %s11, 4
      %s2270 = int_to_ptr.hbm [resolvable:$true] %s2269
      %2272 = dma.vmem_to_hbm [thread:$0]  %s2268, 16, %s2270, [#allocation6]
    $region65: #{forward.1} parent=1 // pred_fallthru
      _
    // Predicated region
    $region66: #{forward.1} parent=1 // pred_check
      _
    $region67: #{forward.1} parent=1 // pred_check_branch
      %2274 = sbr.rel (0) target = $region69
    $region68: #{forward.1} parent=1 // pred_region
      %2276 = dma.done [#allocation6], 16
    $region69: #{forward.1} parent=1 // pred_fallthru
      _
    %2277 = vsyncpa [#allocation5], 1
    %2278 = vsyncpa [#allocation8], 1
    %2279 = vsyncpa [#allocation11], 1
    %2280 = vsyncpa [#allocation6], 1

</llo_original>
